<compile_context>
chip_gen: v5e
topology: v5e:2x2
jax: 0.10.0
libtpu: 0.0.40
codegen_flags: <defaults>
</compile_context>

<pallas_src>
import functools

import jax
import jax.numpy as jnp
from jax import lax
from jax.experimental import pallas as pl
from jax.experimental.pallas import tpu as pltpu

_BIG = 99999999.0


def _round_up(x, m):
    return (x + m - 1) // m * m


def _triplet_kernel(x_row_ref, x_col_ref, t_row_ref, t_col_ref, o_ref,
                    m_ap_ref, m_an_ref, *, margin, n_true, tm, tn):
    i = pl.program_id(0)          # anchor-row block
    j = pl.program_id(1)          # candidate-col block (reduction axis)

    @pl.when(j == 0)
    def _init():
        m_ap_ref[...] = jnp.full_like(m_ap_ref, -_BIG)
        m_an_ref[...] = jnp.full_like(m_an_ref, _BIG)

    # --- F.normalize(p=2, dim=1): x * rsqrt(max(||x||^2, eps^2)) (EUP path) ---
    xr = x_row_ref[...]
    xc = x_col_ref[...]
    xr_n = xr * lax.rsqrt(jnp.maximum(jnp.sum(xr * xr, axis=1, keepdims=True), 1e-24))
    xc_n = xc * lax.rsqrt(jnp.maximum(jnp.sum(xc * xc, axis=1, keepdims=True), 1e-24))

    # --- Gram on the MXU, contracting the feature dim of both operands (no .T) ---
    gram = lax.dot_general(
        xr_n, xc_n,
        dimension_numbers=(((1,), (1,)), ((), ())),
        preferred_element_type=jnp.float32)                 # (TM, TN)

    # Rows are unit-norm -> ||a - b||^2 = 2 - 2 <a, b>.
    dist = jnp.sqrt(jnp.maximum(2.0 - 2.0 * gram, 0.0))     # (TM, TN)

    # --- masks (boolean, no f32 mask temporaries) ---
    t_row = t_row_ref[...]                                   # (TM, 1) int32
    t_col = t_col_ref[...]                                   # (1, TN) int32
    mask_pos = t_row == t_col                                # (TM, TN) bool

    col_idx = j * tn + lax.broadcasted_iota(jnp.int32, (1, tn), 1)
    col_valid = col_idx < n_true                             # (1, TN) bool

    ap_cand = jnp.where(mask_pos & col_valid, dist, -_BIG)   # positives only
    an_cand = jnp.where(mask_pos | (~col_valid), _BIG, dist)  # negatives only

    # --- online hardest-positive / hardest-negative accumulation ---
    m_ap_ref[...] = jnp.maximum(m_ap_ref[...],
                                jnp.max(ap_cand, axis=1, keepdims=True))
    m_an_ref[...] = jnp.minimum(m_an_ref[...],
                                jnp.min(an_cand, axis=1, keepdims=True))

    @pl.when(j == pl.num_programs(1) - 1)
    def _finalize():
        row_idx = i * tm + lax.broadcasted_iota(jnp.int32, (tm, 1), 0)
        row_valid = row_idx < n_true
        hinge = jnp.maximum(m_ap_ref[...] - m_an_ref[...] + margin, 0.0)
        o_ref[...] = jnp.where(row_valid, hinge, 0.0)        # (TM, 1) per-row loss


def triplet_loss(inputs, targets, margin=0.3):
    """inputs: (N, D) float array, targets: (N,) int labels -> scalar f32 loss."""
    n, d = inputs.shape

    # Tile sizes: 128-aligned (v5e MXU / lanes), 256 when the batch is large
    # enough (v6e/v7x 256x256 MXU).  TM == TN keeps the padding logic simple.
    tn = 128 if n <= 128 else 256
    tm = tn
    n_pad = _round_up(n, tm)
    d_pad = _round_up(d, 128)

    # Lane-dense, padded layouts built in the wrapper (not in the kernel).
    x = jnp.zeros((n_pad, d_pad), jnp.float32).at[:n, :d].set(
        inputs.astype(jnp.float32))
    t = jnp.full((n_pad,), -1, jnp.int32).at[:n].set(targets.astype(jnp.int32))
    t_rows = t.reshape(n_pad, 1)
    t_cols = t.reshape(1, n_pad)

    grid = (n_pad // tm, n_pad // tn)

    # Advisory cost estimate (gram matmul dominates).
    cost = pl.CostEstimate(
        flops=int(2 * n_pad * n_pad * d_pad + 12 * n_pad * n_pad),
        transcendentals=int(n_pad * n_pad + 2 * n_pad * d_pad),
        bytes_accessed=int(4 * n_pad * d_pad * (grid[0] + 1) + 4 * n_pad * 3),
    )

    per_row = pl.pallas_call(
        functools.partial(_triplet_kernel, margin=float(margin),
                          n_true=n, tm=tm, tn=tn),
        out_shape=jax.ShapeDtypeStruct((n_pad, 1), jnp.float32),
        grid_spec=pltpu.PrefetchScalarGridSpec(
            num_scalar_prefetch=0,
            grid=grid,
            in_specs=[
                pl.BlockSpec((tm, d_pad), lambda i, j: (i, 0)),  # anchor rows
                pl.BlockSpec((tn, d_pad), lambda i, j: (j, 0)),  # candidate cols
                pl.BlockSpec((tm, 1), lambda i, j: (i, 0)),      # row labels
                pl.BlockSpec((1, tn), lambda i, j: (0, j)),      # col labels
            ],
            out_specs=pl.BlockSpec((tm, 1), lambda i, j: (i, 0)),
            scratch_shapes=[
                pltpu.VMEM((tm, 1), jnp.float32),   # running hardest-positive
                pltpu.VMEM((tm, 1), jnp.float32),   # running hardest-negative
            ],
        ),
        compiler_params=pltpu.CompilerParams(
            dimension_semantics=("parallel", "arbitrary")),
        cost_estimate=cost,
    )(x, x, t_rows, t_cols)

    # Padded rows were zeroed in-kernel; mean over the true batch size.
    return jnp.sum(per_row) / jnp.float32(n)


def _reference(inputs, targets, margin=0.3):
    x = inputs / jnp.maximum(
        jnp.linalg.norm(inputs, axis=1, keepdims=True), 1e-12)
    sq = jnp.sum(x * x, axis=1)
    d2 = sq[:, None] + sq[None, :] - 2.0 * (x @ x.T)
    dist = jnp.sqrt(jnp.maximum(d2, 0.0))
    mask_pos = (targets[:, None] == targets[None, :]).astype(jnp.float32)
    mask_neg = 1.0 - mask_pos
    dist_ap = jnp.max(dist - mask_neg * _BIG, axis=1)
    dist_an = jnp.min(dist + mask_pos * _BIG, axis=1)
    return jnp.mean(jnp.maximum(dist_ap - dist_an + margin, 0.0))


if __name__ == "__main__":
    key = jax.random.PRNGKey(0)
    k_x, k_t = jax.random.split(key)

    N, D = 8, 32  # small batch of embeddings, as the module's forward implies
    inputs = jax.random.normal(k_x, (N, D), dtype=jnp.float32)
    targets = jax.random.randint(k_t, (N,), 0, 3, dtype=jnp.int32)

    loss = triplet_loss(inputs, targets, margin=0.3)
    jax.block_until_ready(loss)

    ref = _reference(inputs, targets, margin=0.3)
    assert abs(float(loss) - float(ref)) < 1e-4, (float(loss), float(ref))
    print("KERNEL_OK")
</pallas_src>

<mosaic_0001>
module attributes {stable_mosaic.version = 11 : i64} {
  func.func @_triplet_kernel(%arg0: i32, %arg1: i32, %arg2: memref<128x128xf32, #tpu.memory_space<vmem>>, %arg3: memref<128x128xf32, #tpu.memory_space<vmem>>, %arg4: memref<128x1xi32, #tpu.memory_space<vmem>>, %arg5: memref<1x128xi32, #tpu.memory_space<vmem>>, %arg6: memref<128x1xf32, #tpu.memory_space<vmem>>, %arg7: memref<128x1xf32, #tpu.memory_space<vmem>>, %arg8: memref<128x1xf32, #tpu.memory_space<vmem>>) attributes {dimension_semantics = [#tpu.dimension_semantics<parallel>, #tpu.dimension_semantics<arbitrary>], iteration_bounds = array<i64: 1, 1>, scalar_prefetch = 0 : i64, scratch_operands = 2 : i64, tpu.core_type = #tpu.core_type<tc>, window_params = [{transform_indices = @transform_0, window_bounds = array<i64: 128, 128>}, {transform_indices = @transform_1, window_bounds = array<i64: 128, 128>}, {transform_indices = @transform_2, window_bounds = array<i64: 128, 1>}, {transform_indices = @transform_3, window_bounds = array<i64: 1, 128>}, {transform_indices = @transform_4, window_bounds = array<i64: 128, 1>}]} {
    %c0_i32 = arith.constant 0 : i32
    %0 = arith.cmpi eq, %arg1, %c0_i32 : i32
    %1 = arith.extui %0 : i1 to i32
    %c0_i32_0 = arith.constant 0 : i32
    %2 = arith.cmpi ne, %1, %c0_i32_0 : i32
    scf.if %2 {
      %cst_30 = arith.constant -1.000000e+08 : f32
      %62 = vector.broadcast %cst_30 : f32 to vector<128x1xf32>
      %c0_31 = arith.constant 0 : index
      %c0_32 = arith.constant 0 : index
      %63 = vector.load %arg7[%c0_31, %c0_32] : memref<128x1xf32, #tpu.memory_space<vmem>>, vector<128x1xf32>
      tpu.vector_store %arg7[%c0_31, %c0_32], %62 {strides = array<i32>} : memref<128x1xf32, #tpu.memory_space<vmem>>, vector<128x1xf32>,
      %cst_33 = arith.constant 1.000000e+08 : f32
      %64 = vector.broadcast %cst_33 : f32 to vector<128x1xf32>
      %c0_34 = arith.constant 0 : index
      %c0_35 = arith.constant 0 : index
      %65 = vector.load %arg8[%c0_34, %c0_35] : memref<128x1xf32, #tpu.memory_space<vmem>>, vector<128x1xf32>
      tpu.vector_store %arg8[%c0_34, %c0_35], %64 {strides = array<i32>} : memref<128x1xf32, #tpu.memory_space<vmem>>, vector<128x1xf32>,
    } else {
    }
    %c0 = arith.constant 0 : index
    %c0_1 = arith.constant 0 : index
    %3 = vector.load %arg2[%c0, %c0_1] : memref<128x128xf32, #tpu.memory_space<vmem>>, vector<128x128xf32>
    %c0_2 = arith.constant 0 : index
    %c0_3 = arith.constant 0 : index
    %4 = vector.load %arg3[%c0_2, %c0_3] : memref<128x128xf32, #tpu.memory_space<vmem>>, vector<128x128xf32>
    %5 = arith.mulf %3, %3 : vector<128x128xf32>
    %cst = arith.constant dense<0.000000e+00> : vector<128xf32>
    %6 = vector.multi_reduction <add>, %5, %cst [1] : vector<128x128xf32> to vector<128xf32>
    %7 = vector.shape_cast %6 : vector<128xf32> to vector<128x1xf32>
    %cst_4 = arith.constant 1.000000e-24 : f32
    %8 = vector.broadcast %cst_4 : f32 to vector<128x1xf32>
    %9 = arith.maximumf %7, %8 : vector<128x1xf32>
    %10 = math.rsqrt %9 : vector<128x1xf32>
    %11 = vector.broadcast %10 : vector<128x1xf32> to vector<128x128xf32>
    %12 = arith.mulf %3, %11 : vector<128x128xf32>
    %13 = arith.mulf %4, %4 : vector<128x128xf32>
    %cst_5 = arith.constant dense<0.000000e+00> : vector<128xf32>
    %14 = vector.multi_reduction <add>, %13, %cst_5 [1] : vector<128x128xf32> to vector<128xf32>
    %15 = vector.shape_cast %14 : vector<128xf32> to vector<128x1xf32>
    %cst_6 = arith.constant 1.000000e-24 : f32
    %16 = vector.broadcast %cst_6 : f32 to vector<128x1xf32>
    %17 = arith.maximumf %15, %16 : vector<128x1xf32>
    %18 = math.rsqrt %17 : vector<128x1xf32>
    %19 = vector.broadcast %18 : vector<128x1xf32> to vector<128x128xf32>
    %20 = arith.mulf %4, %19 : vector<128x128xf32>
    %cst_7 = arith.constant dense<0.000000e+00> : vector<128x128xf32>
    %21 = tpu.matmul %12, %20, %cst_7 {dimension_numbers = #tpu.dot_dimension_numbers<[1], [1], [0], [0], [0, 0, 1, 0], [], []>} : vector<128x128xf32>, vector<128x128xf32>, vector<128x128xf32> -> vector<128x128xf32>
    %cst_8 = arith.constant 2.000000e+00 : f32
    %22 = vector.broadcast %cst_8 : f32 to vector<128x128xf32>
    %23 = arith.mulf %22, %21 : vector<128x128xf32>
    %cst_9 = arith.constant 2.000000e+00 : f32
    %24 = vector.broadcast %cst_9 : f32 to vector<128x128xf32>
    %25 = arith.subf %24, %23 : vector<128x128xf32>
    %cst_10 = arith.constant 0.000000e+00 : f32
    %26 = vector.broadcast %cst_10 : f32 to vector<128x128xf32>
    %27 = arith.maximumf %25, %26 : vector<128x128xf32>
    %28 = math.sqrt %27 : vector<128x128xf32>
    %c0_11 = arith.constant 0 : index
    %c0_12 = arith.constant 0 : index
    %29 = vector.load %arg4[%c0_11, %c0_12] : memref<128x1xi32, #tpu.memory_space<vmem>>, vector<128x1xi32>
    %c0_13 = arith.constant 0 : index
    %c0_14 = arith.constant 0 : index
    %30 = vector.load %arg5[%c0_13, %c0_14] : memref<1x128xi32, #tpu.memory_space<vmem>>, vector<1x128xi32>
    %31 = vector.broadcast %29 : vector<128x1xi32> to vector<128x128xi32>
    %32 = vector.broadcast %30 : vector<1x128xi32> to vector<128x128xi32>
    %33 = arith.cmpi eq, %31, %32 : vector<128x128xi32>
    %c128_i32 = arith.constant 128 : i32
    %34 = arith.muli %arg1, %c128_i32 : i32
    %35 = tpu.iota {dimensions = array<i32: 1>} : vector<1x128xi32>
    %36 = vector.broadcast %34 : i32 to vector<1x128xi32>
    %37 = arith.addi %36, %35 : vector<1x128xi32>
    %c8_i32 = arith.constant 8 : i32
    %38 = vector.broadcast %c8_i32 : i32 to vector<1x128xi32>
    %39 = arith.cmpi slt, %37, %38 : vector<1x128xi32>
    %40 = vector.broadcast %39 : vector<1x128xi1> to vector<128x128xi1>
    %41 = arith.andi %33, %40 : vector<128x128xi1>
    %cst_15 = arith.constant -1.000000e+08 : f32
    %42 = vector.broadcast %cst_15 : f32 to vector<128x128xf32>
    %43 = arith.select %41, %28, %42 : vector<128x128xi1>, vector<128x128xf32>
    %cst_16 = arith.constant dense<true> : vector<1x128xi1>
    %44 = arith.xori %39, %cst_16 : vector<1x128xi1>
    %45 = vector.broadcast %44 : vector<1x128xi1> to vector<128x128xi1>
    %46 = arith.ori %33, %45 : vector<128x128xi1>
    %cst_17 = arith.constant 1.000000e+08 : f32
    %47 = vector.broadcast %cst_17 : f32 to vector<128x128xf32>
    %48 = arith.select %46, %47, %28 : vector<128x128xi1>, vector<128x128xf32>
    %c0_18 = arith.constant 0 : index
    %c0_19 = arith.constant 0 : index
    %49 = vector.load %arg7[%c0_18, %c0_19] : memref<128x1xf32, #tpu.memory_space<vmem>>, vector<128x1xf32>
    %cst_20 = arith.constant dense<0xFF800000> : vector<128xf32>
    %50 = vector.multi_reduction <maximumf>, %43, %cst_20 [1] : vector<128x128xf32> to vector<128xf32>
    %51 = vector.shape_cast %50 : vector<128xf32> to vector<128x1xf32>
    %52 = arith.maximumf %49, %51 : vector<128x1xf32>
    %c0_21 = arith.constant 0 : index
    %c0_22 = arith.constant 0 : index
    %53 = vector.load %arg7[%c0_21, %c0_22] : memref<128x1xf32, #tpu.memory_space<vmem>>, vector<128x1xf32>
    tpu.vector_store %arg7[%c0_21, %c0_22], %52 {strides = array<i32>} : memref<128x1xf32, #tpu.memory_space<vmem>>, vector<128x1xf32>,
    %c0_23 = arith.constant 0 : index
    %c0_24 = arith.constant 0 : index
    %54 = vector.load %arg8[%c0_23, %c0_24] : memref<128x1xf32, #tpu.memory_space<vmem>>, vector<128x1xf32>
    %cst_25 = arith.constant dense<0x7F800000> : vector<128xf32>
    %55 = vector.multi_reduction <minimumf>, %48, %cst_25 [1] : vector<128x128xf32> to vector<128xf32>
    %56 = vector.shape_cast %55 : vector<128xf32> to vector<128x1xf32>
    %57 = arith.minimumf %54, %56 : vector<128x1xf32>
    %c0_26 = arith.constant 0 : index
    %c0_27 = arith.constant 0 : index
    %58 = vector.load %arg8[%c0_26, %c0_27] : memref<128x1xf32, #tpu.memory_space<vmem>>, vector<128x1xf32>
    tpu.vector_store %arg8[%c0_26, %c0_27], %57 {strides = array<i32>} : memref<128x1xf32, #tpu.memory_space<vmem>>, vector<128x1xf32>,
    %c0_i32_28 = arith.constant 0 : i32
    %59 = arith.cmpi eq, %arg1, %c0_i32_28 : i32
    %60 = arith.extui %59 : i1 to i32
    %c0_i32_29 = arith.constant 0 : i32
    %61 = arith.cmpi ne, %60, %c0_i32_29 : i32
    scf.if %61 {
      %c128_i32_30 = arith.constant 128 : i32
      %62 = arith.muli %arg0, %c128_i32_30 : i32
      %63 = tpu.iota {dimensions = array<i32: 0>} : vector<128x1xi32>
      %64 = vector.broadcast %62 : i32 to vector<128x1xi32>
      %65 = arith.addi %64, %63 : vector<128x1xi32>
      %c8_i32_31 = arith.constant 8 : i32
      %66 = vector.broadcast %c8_i32_31 : i32 to vector<128x1xi32>
      %67 = arith.cmpi slt, %65, %66 : vector<128x1xi32>
      %c0_32 = arith.constant 0 : index
      %c0_33 = arith.constant 0 : index
      %68 = vector.load %arg7[%c0_32, %c0_33] : memref<128x1xf32, #tpu.memory_space<vmem>>, vector<128x1xf32>
      %c0_34 = arith.constant 0 : index
      %c0_35 = arith.constant 0 : index
      %69 = vector.load %arg8[%c0_34, %c0_35] : memref<128x1xf32, #tpu.memory_space<vmem>>, vector<128x1xf32>
      %70 = arith.subf %68, %69 : vector<128x1xf32>
      %cst_36 = arith.constant 3.000000e-01 : f32
      %71 = vector.broadcast %cst_36 : f32 to vector<128x1xf32>
      %72 = arith.addf %70, %71 : vector<128x1xf32>
      %cst_37 = arith.constant 0.000000e+00 : f32
      %73 = vector.broadcast %cst_37 : f32 to vector<128x1xf32>
      %74 = arith.maximumf %72, %73 : vector<128x1xf32>
      %cst_38 = arith.constant 0.000000e+00 : f32
      %75 = vector.broadcast %cst_38 : f32 to vector<128x1xf32>
      %76 = arith.select %67, %74, %75 : vector<128x1xi1>, vector<128x1xf32>
      %c0_39 = arith.constant 0 : index
      %c0_40 = arith.constant 0 : index
      %77 = vector.load %arg6[%c0_39, %c0_40] : memref<128x1xf32, #tpu.memory_space<vmem>>, vector<128x1xf32>
      tpu.vector_store %arg6[%c0_39, %c0_40], %76 {strides = array<i32>} : memref<128x1xf32, #tpu.memory_space<vmem>>, vector<128x1xf32>,
    } else {
    }
    return
  }
  func.func @transform_0(%arg0: i32, %arg1: i32) -> (i32, i32) {
    %c0_i32 = arith.constant 0 : i32
    %c0_i32_0 = arith.constant 0 : i32
    return %arg0, %c0_i32 : i32, i32
  }
  func.func @transform_1(%arg0: i32, %arg1: i32) -> (i32, i32) {
    %c0_i32 = arith.constant 0 : i32
    %c0_i32_0 = arith.constant 0 : i32
    return %arg1, %c0_i32 : i32, i32
  }
  func.func @transform_2(%arg0: i32, %arg1: i32) -> (i32, i32) {
    %c0_i32 = arith.constant 0 : i32
    %c0_i32_0 = arith.constant 0 : i32
    return %arg0, %c0_i32 : i32, i32
  }
  func.func @transform_3(%arg0: i32, %arg1: i32) -> (i32, i32) {
    %c0_i32 = arith.constant 0 : i32
    %c0_i32_0 = arith.constant 0 : i32
    return %c0_i32, %arg1 : i32, i32
  }
  func.func @transform_4(%arg0: i32, %arg1: i32) -> (i32, i32) {
    %c0_i32 = arith.constant 0 : i32
    %c0_i32_0 = arith.constant 0 : i32
    return %arg0, %c0_i32 : i32, i32
  }
}

</mosaic_0001>

<llo_original>
// kernel: tpu_custom_call.1
$region0: #{tpu_custom_call.1}
  #allocation0 [shape = 'u32[]', space=smem, size = 0x4, offset = 0x4, fixed_abs, tag = 'smem constant byte address 0x4 - core index']
  #allocation1 [shape = 'u32[72,128]{1,0:T(1,128)}', space=vmem, size = 0x9000, scoped, tag = 'internal scratch']
  #allocation2 [shape = 'f32[128,1]{1,0:T(8,128)}', space=vmem, size = 0x10000, scoped, tag = 'scratch operand']
  #allocation3 [shape = 'f32[128,1]{1,0:T(8,128)}', space=vmem, size = 0x10000, scoped, tag = 'scratch operand']
  %s0 = inlined_call_operand.vmem [shape: f32[128,128], index: 0, kind: input, shape index: {}]
  %s1 = inlined_call_operand.hbm [shape: f32[128,128], index: 1, kind: input, shape index: {}]
  %s2 = inlined_call_operand.vmem [shape: s32[128,1], index: 2, kind: input, shape index: {}]
  %s3 = inlined_call_operand.vmem [shape: s32[1,128], index: 3, kind: input, shape index: {}]
  %s4 = inlined_call_operand.vmem [shape: f32[128,1], index: 4, kind: output, shape index: {}]
  %s5 = sld [smem:[#allocation0]]
  $region38: #{tpu_custom_call.1} parent=0
    _
  %s7 = ssub.s32 1, %s5
  %s8 = scalar_select 0, %s7, %s5
  $region1: #{tpu_custom_call.1} parent=0
    #allocation4 [shape = 'u8[65536]{0}', space=vmem, size = 0x10000, scoped, tag = 'input window, operand 1, single buffered']
    #allocation5 [shape = 's32[1]{0}', space=sflag, size = 0x4, scoped, tag = 'scoped memory for tpu_custom_call.1']
    %9 = vsyncpa [#allocation5], 0
    // Predicated region
    $region2: #{tpu_custom_call.1} parent=1 // pred_check
      _
    $region3: #{tpu_custom_call.1} parent=1 // pred_check_branch
      %11 = sbr.rel (0) target = $region5
    $region4: #{tpu_custom_call.1} parent=1 // pred_region
      _
    $region5: #{tpu_custom_call.1} parent=1 // pred_fallthru
      _
    // Predicated region
    $region6: #{tpu_custom_call.1} parent=1 // pred_check
      _
    $region7: #{tpu_custom_call.1} parent=1 // pred_check_branch
      %13 = sbr.rel (0) target = $region9
    $region8: #{tpu_custom_call.1} parent=1 // pred_region
      %15 = vsyncadd [#allocation5], 0
      %s16 = sshll.u32 %s1, 4
      %s17 = int_to_ptr.hbm [resolvable:$true] %s16
      %s18 = sshll.u32 [#allocation4], 4
      %s19 = int_to_ptr.vmem [resolvable:$true] %s18
      %24 = dma.hbm_to_vmem [thread:$0]  %s17, 2048, %s19, [#allocation5], 128, 128, 8
    $region9: #{tpu_custom_call.1} parent=1 // pred_fallthru
      _
    // Predicated region
    $region10: #{tpu_custom_call.1} parent=1 // pred_check
      _
    $region11: #{tpu_custom_call.1} parent=1 // pred_check_branch
      %26 = sbr.rel (0) target = $region13
    $region12: #{tpu_custom_call.1} parent=1 // pred_region
      _
    $region13: #{tpu_custom_call.1} parent=1 // pred_fallthru
      _
    // Predicated region
    $region14: #{tpu_custom_call.1} parent=1 // pred_check
      _
    $region15: #{tpu_custom_call.1} parent=1 // pred_check_branch
      %28 = sbr.rel (0) target = $region17
    $region16: #{tpu_custom_call.1} parent=1 // pred_region
      _
    $region17: #{tpu_custom_call.1} parent=1 // pred_fallthru
      _
    // Predicated region
    $region18: #{tpu_custom_call.1} parent=1 // pred_check
      _
    $region19: #{tpu_custom_call.1} parent=1 // pred_check_branch
      %30 = sbr.rel (0) target = $region21
    $region20: #{tpu_custom_call.1} parent=1 // pred_region
      %32 = dma.done [#allocation5], 2048
    $region21: #{tpu_custom_call.1} parent=1 // pred_fallthru
      _
    %p33 = scmp.eq.s32.totalorder 0, 0
    // Predicated region
    $region22: #{tpu_custom_call.1} parent=1 // pred_check
      %p34 = pneg %p33
    $region23: #{tpu_custom_call.1} parent=1 // pred_check_branch
      %36 = sbr.rel (%p34) target = $region25
    $region24: #{tpu_custom_call.1} parent=1 // pred_region
      %vm37 = vcmask 7168
      %38 = vst.msk [vmem:[#allocation2] sm:$0xff] %vm37, -1e+08
      %39 = vst.msk [vmem:[#allocation2 + $0x8] sm:$0xff] %vm37, -1e+08
      %40 = vst.msk [vmem:[#allocation2 + $0x10] sm:$0xff] %vm37, -1e+08
      %41 = vst.msk [vmem:[#allocation2 + $0x18] sm:$0xff] %vm37, -1e+08
      %42 = vst.msk [vmem:[#allocation2 + $0x20] sm:$0xff] %vm37, -1e+08
      %43 = vst.msk [vmem:[#allocation2 + $0x28] sm:$0xff] %vm37, -1e+08
      %44 = vst.msk [vmem:[#allocation2 + $0x30] sm:$0xff] %vm37, -1e+08
      %45 = vst.msk [vmem:[#allocation2 + $0x38] sm:$0xff] %vm37, -1e+08
      %46 = vst.msk [vmem:[#allocation2 + $0x40] sm:$0xff] %vm37, -1e+08
      %47 = vst.msk [vmem:[#allocation2 + $0x48] sm:$0xff] %vm37, -1e+08
      %48 = vst.msk [vmem:[#allocation2 + $0x50] sm:$0xff] %vm37, -1e+08
      %49 = vst.msk [vmem:[#allocation2 + $0x58] sm:$0xff] %vm37, -1e+08
      %50 = vst.msk [vmem:[#allocation2 + $0x60] sm:$0xff] %vm37, -1e+08
      %51 = vst.msk [vmem:[#allocation2 + $0x68] sm:$0xff] %vm37, -1e+08
      %52 = vst.msk [vmem:[#allocation2 + $0x70] sm:$0xff] %vm37, -1e+08
      %53 = vst.msk [vmem:[#allocation2 + $0x78] sm:$0xff] %vm37, -1e+08
      %54 = vst.msk [vmem:[#allocation3] sm:$0xff] %vm37, 1e+08
      %55 = vst.msk [vmem:[#allocation3 + $0x8] sm:$0xff] %vm37, 1e+08
      %56 = vst.msk [vmem:[#allocation3 + $0x10] sm:$0xff] %vm37, 1e+08
      %57 = vst.msk [vmem:[#allocation3 + $0x18] sm:$0xff] %vm37, 1e+08
      %58 = vst.msk [vmem:[#allocation3 + $0x20] sm:$0xff] %vm37, 1e+08
      %59 = vst.msk [vmem:[#allocation3 + $0x28] sm:$0xff] %vm37, 1e+08
      %60 = vst.msk [vmem:[#allocation3 + $0x30] sm:$0xff] %vm37, 1e+08
      %61 = vst.msk [vmem:[#allocation3 + $0x38] sm:$0xff] %vm37, 1e+08
      %62 = vst.msk [vmem:[#allocation3 + $0x40] sm:$0xff] %vm37, 1e+08
      %63 = vst.msk [vmem:[#allocation3 + $0x48] sm:$0xff] %vm37, 1e+08
      %64 = vst.msk [vmem:[#allocation3 + $0x50] sm:$0xff] %vm37, 1e+08
      %65 = vst.msk [vmem:[#allocation3 + $0x58] sm:$0xff] %vm37, 1e+08
      %66 = vst.msk [vmem:[#allocation3 + $0x60] sm:$0xff] %vm37, 1e+08
      %67 = vst.msk [vmem:[#allocation3 + $0x68] sm:$0xff] %vm37, 1e+08
      %68 = vst.msk [vmem:[#allocation3 + $0x70] sm:$0xff] %vm37, 1e+08
      %69 = vst.msk [vmem:[#allocation3 + $0x78] sm:$0xff] %vm37, 1e+08
    $region25: #{tpu_custom_call.1} parent=1 // pred_fallthru
      _
    %v70 = vld [vmem:[%s0] sm:$0xff]
    %v71 = vld [vmem:[%s0 + $0x8] sm:$0xff]
    %v72 = vld [vmem:[%s0 + $0x10] sm:$0xff]
    %v73 = vld [vmem:[%s0 + $0x18] sm:$0xff]
    %v74 = vld [vmem:[%s0 + $0x20] sm:$0xff]
    %v75 = vld [vmem:[%s0 + $0x28] sm:$0xff]
    %v76 = vld [vmem:[%s0 + $0x30] sm:$0xff]
    %v77 = vld [vmem:[%s0 + $0x38] sm:$0xff]
    %v78 = vld [vmem:[%s0 + $0x40] sm:$0xff]
    %v79 = vld [vmem:[%s0 + $0x48] sm:$0xff]
    %v80 = vld [vmem:[%s0 + $0x50] sm:$0xff]
    %v81 = vld [vmem:[%s0 + $0x58] sm:$0xff]
    %v82 = vld [vmem:[%s0 + $0x60] sm:$0xff]
    %v83 = vld [vmem:[%s0 + $0x68] sm:$0xff]
    %v84 = vld [vmem:[%s0 + $0x70] sm:$0xff]
    %v85 = vld [vmem:[%s0 + $0x78] sm:$0xff]
    %v86 = vld [vmem:[#allocation4] sm:$0xff]
    %v87 = vld [vmem:[#allocation4 + $0x8] sm:$0xff]
    %v88 = vld [vmem:[#allocation4 + $0x10] sm:$0xff]
    %v89 = vld [vmem:[#allocation4 + $0x18] sm:$0xff]
    %v90 = vld [vmem:[#allocation4 + $0x20] sm:$0xff]
    %v91 = vld [vmem:[#allocation4 + $0x28] sm:$0xff]
    %v92 = vld [vmem:[#allocation4 + $0x30] sm:$0xff]
    %v93 = vld [vmem:[#allocation4 + $0x38] sm:$0xff]
    %v94 = vld [vmem:[#allocation4 + $0x40] sm:$0xff]
    %v95 = vld [vmem:[#allocation4 + $0x48] sm:$0xff]
    %v96 = vld [vmem:[#allocation4 + $0x50] sm:$0xff]
    %v97 = vld [vmem:[#allocation4 + $0x58] sm:$0xff]
    %v98 = vld [vmem:[#allocation4 + $0x60] sm:$0xff]
    %v99 = vld [vmem:[#allocation4 + $0x68] sm:$0xff]
    %v100 = vld [vmem:[#allocation4 + $0x70] sm:$0xff]
    %v101 = vld [vmem:[#allocation4 + $0x78] sm:$0xff]
    %v102 = vmul.f32 %v70, %v70
    %v103 = vmul.f32 %v71, %v71
    %v104 = vmul.f32 %v72, %v72
    %v105 = vmul.f32 %v73, %v73
    %v106 = vmul.f32 %v74, %v74
    %v107 = vmul.f32 %v75, %v75
    %v108 = vmul.f32 %v76, %v76
    %v109 = vmul.f32 %v77, %v77
    %v110 = vmul.f32 %v78, %v78
    %v111 = vmul.f32 %v79, %v79
    %v112 = vmul.f32 %v80, %v80
    %v113 = vmul.f32 %v81, %v81
    %v114 = vmul.f32 %v82, %v82
    %v115 = vmul.f32 %v83, %v83
    %v116 = vmul.f32 %v84, %v84
    %v117 = vmul.f32 %v85, %v85
    %118 = vadd.xlane.f32.xlu0 %v102
    %v119 = vpop.xlane.xlu0 %118
    %120 = vadd.xlane.f32.xlu0 %v103
    %v121 = vpop.xlane.xlu0 %120
    %122 = vadd.xlane.f32.xlu0 %v104
    %v123 = vpop.xlane.xlu0 %122
    %124 = vadd.xlane.f32.xlu0 %v105
    %v125 = vpop.xlane.xlu0 %124
    %126 = vadd.xlane.f32.xlu0 %v106
    %v127 = vpop.xlane.xlu0 %126
    %128 = vadd.xlane.f32.xlu0 %v107
    %v129 = vpop.xlane.xlu0 %128
    %130 = vadd.xlane.f32.xlu0 %v108
    %v131 = vpop.xlane.xlu0 %130
    %132 = vadd.xlane.f32.xlu0 %v109
    %v133 = vpop.xlane.xlu0 %132
    %134 = vadd.xlane.f32.xlu0 %v110
    %v135 = vpop.xlane.xlu0 %134
    %136 = vadd.xlane.f32.xlu0 %v111
    %v137 = vpop.xlane.xlu0 %136
    %138 = vadd.xlane.f32.xlu0 %v112
    %v139 = vpop.xlane.xlu0 %138
    %140 = vadd.xlane.f32.xlu0 %v113
    %v141 = vpop.xlane.xlu0 %140
    %142 = vadd.xlane.f32.xlu0 %v114
    %v143 = vpop.xlane.xlu0 %142
    %144 = vadd.xlane.f32.xlu0 %v115
    %v145 = vpop.xlane.xlu0 %144
    %146 = vadd.xlane.f32.xlu0 %v116
    %v147 = vpop.xlane.xlu0 %146
    %148 = vadd.xlane.f32.xlu0 %v117
    %v149 = vpop.xlane.xlu0 %148
    %v150 = vmax.f32 %v119, 1e-24
    %v151 = vmax.f32 %v121, 1e-24
    %v152 = vmax.f32 %v123, 1e-24
    %v153 = vmax.f32 %v125, 1e-24
    %v154 = vmax.f32 %v127, 1e-24
    %v155 = vmax.f32 %v129, 1e-24
    %v156 = vmax.f32 %v131, 1e-24
    %v157 = vmax.f32 %v133, 1e-24
    %v158 = vmax.f32 %v135, 1e-24
    %v159 = vmax.f32 %v137, 1e-24
    %v160 = vmax.f32 %v139, 1e-24
    %v161 = vmax.f32 %v141, 1e-24
    %v162 = vmax.f32 %v143, 1e-24
    %v163 = vmax.f32 %v145, 1e-24
    %v164 = vmax.f32 %v147, 1e-24
    %v165 = vmax.f32 %v149, 1e-24
    %v166 = vrsqrt.pop %v150
    %v167 = vmul.f32 %v166, %v150
    %v168 = vmul.f32 %v167, %v166
    %v169 = vmul.f32 0.5, %v168
    %v170 = vsub.f32 1.5, %v169
    %v171 = vmul.f32 %v166, %v170
    %vm172 = vweird.f32 %v150
    %vm173 = vweird.f32 %v166
    %vm174 = vmor %vm172, %vm173
    %v175 = vsel %vm174, %v166, %v171
    %v176 = vrsqrt.pop %v151
    %v177 = vmul.f32 %v176, %v151
    %v178 = vmul.f32 %v177, %v176
    %v179 = vmul.f32 0.5, %v178
    %v180 = vsub.f32 1.5, %v179
    %v181 = vmul.f32 %v176, %v180
    %vm182 = vweird.f32 %v151
    %vm183 = vweird.f32 %v176
    %vm184 = vmor %vm182, %vm183
    %v185 = vsel %vm184, %v176, %v181
    %v186 = vrsqrt.pop %v152
    %v187 = vmul.f32 %v186, %v152
    %v188 = vmul.f32 %v187, %v186
    %v189 = vmul.f32 0.5, %v188
    %v190 = vsub.f32 1.5, %v189
    %v191 = vmul.f32 %v186, %v190
    %vm192 = vweird.f32 %v152
    %vm193 = vweird.f32 %v186
    %vm194 = vmor %vm192, %vm193
    %v195 = vsel %vm194, %v186, %v191
    %v196 = vrsqrt.pop %v153
    %v197 = vmul.f32 %v196, %v153
    %v198 = vmul.f32 %v197, %v196
    %v199 = vmul.f32 0.5, %v198
    %v200 = vsub.f32 1.5, %v199
    %v201 = vmul.f32 %v196, %v200
    %vm202 = vweird.f32 %v153
    %vm203 = vweird.f32 %v196
    %vm204 = vmor %vm202, %vm203
    %v205 = vsel %vm204, %v196, %v201
    %v206 = vrsqrt.pop %v154
    %v207 = vmul.f32 %v206, %v154
    %v208 = vmul.f32 %v207, %v206
    %v209 = vmul.f32 0.5, %v208
    %v210 = vsub.f32 1.5, %v209
    %v211 = vmul.f32 %v206, %v210
    %vm212 = vweird.f32 %v154
    %vm213 = vweird.f32 %v206
    %vm214 = vmor %vm212, %vm213
    %v215 = vsel %vm214, %v206, %v211
    %v216 = vrsqrt.pop %v155
    %v217 = vmul.f32 %v216, %v155
    %v218 = vmul.f32 %v217, %v216
    %v219 = vmul.f32 0.5, %v218
    %v220 = vsub.f32 1.5, %v219
    %v221 = vmul.f32 %v216, %v220
    %vm222 = vweird.f32 %v155
    %vm223 = vweird.f32 %v216
    %vm224 = vmor %vm222, %vm223
    %v225 = vsel %vm224, %v216, %v221
    %v226 = vrsqrt.pop %v156
    %v227 = vmul.f32 %v226, %v156
    %v228 = vmul.f32 %v227, %v226
    %v229 = vmul.f32 0.5, %v228
    %v230 = vsub.f32 1.5, %v229
    %v231 = vmul.f32 %v226, %v230
    %vm232 = vweird.f32 %v156
    %vm233 = vweird.f32 %v226
    %vm234 = vmor %vm232, %vm233
    %v235 = vsel %vm234, %v226, %v231
    %v236 = vrsqrt.pop %v157
    %v237 = vmul.f32 %v236, %v157
    %v238 = vmul.f32 %v237, %v236
    %v239 = vmul.f32 0.5, %v238
    %v240 = vsub.f32 1.5, %v239
    %v241 = vmul.f32 %v236, %v240
    %vm242 = vweird.f32 %v157
    %vm243 = vweird.f32 %v236
    %vm244 = vmor %vm242, %vm243
    %v245 = vsel %vm244, %v236, %v241
    %v246 = vrsqrt.pop %v158
    %v247 = vmul.f32 %v246, %v158
    %v248 = vmul.f32 %v247, %v246
    %v249 = vmul.f32 0.5, %v248
    %v250 = vsub.f32 1.5, %v249
    %v251 = vmul.f32 %v246, %v250
    %vm252 = vweird.f32 %v158
    %vm253 = vweird.f32 %v246
    %vm254 = vmor %vm252, %vm253
    %v255 = vsel %vm254, %v246, %v251
    %v256 = vrsqrt.pop %v159
    %v257 = vmul.f32 %v256, %v159
    %v258 = vmul.f32 %v257, %v256
    %v259 = vmul.f32 0.5, %v258
    %v260 = vsub.f32 1.5, %v259
    %v261 = vmul.f32 %v256, %v260
    %vm262 = vweird.f32 %v159
    %vm263 = vweird.f32 %v256
    %vm264 = vmor %vm262, %vm263
    %v265 = vsel %vm264, %v256, %v261
    %v266 = vrsqrt.pop %v160
    %v267 = vmul.f32 %v266, %v160
    %v268 = vmul.f32 %v267, %v266
    %v269 = vmul.f32 0.5, %v268
    %v270 = vsub.f32 1.5, %v269
    %v271 = vmul.f32 %v266, %v270
    %vm272 = vweird.f32 %v160
    %vm273 = vweird.f32 %v266
    %vm274 = vmor %vm272, %vm273
    %v275 = vsel %vm274, %v266, %v271
    %v276 = vrsqrt.pop %v161
    %v277 = vmul.f32 %v276, %v161
    %v278 = vmul.f32 %v277, %v276
    %v279 = vmul.f32 0.5, %v278
    %v280 = vsub.f32 1.5, %v279
    %v281 = vmul.f32 %v276, %v280
    %vm282 = vweird.f32 %v161
    %vm283 = vweird.f32 %v276
    %vm284 = vmor %vm282, %vm283
    %v285 = vsel %vm284, %v276, %v281
    %v286 = vrsqrt.pop %v162
    %v287 = vmul.f32 %v286, %v162
    %v288 = vmul.f32 %v287, %v286
    %v289 = vmul.f32 0.5, %v288
    %v290 = vsub.f32 1.5, %v289
    %v291 = vmul.f32 %v286, %v290
    %vm292 = vweird.f32 %v162
    %vm293 = vweird.f32 %v286
    %vm294 = vmor %vm292, %vm293
    %v295 = vsel %vm294, %v286, %v291
    %v296 = vrsqrt.pop %v163
    %v297 = vmul.f32 %v296, %v163
    %v298 = vmul.f32 %v297, %v296
    %v299 = vmul.f32 0.5, %v298
    %v300 = vsub.f32 1.5, %v299
    %v301 = vmul.f32 %v296, %v300
    %vm302 = vweird.f32 %v163
    %vm303 = vweird.f32 %v296
    %vm304 = vmor %vm302, %vm303
    %v305 = vsel %vm304, %v296, %v301
    %v306 = vrsqrt.pop %v164
    %v307 = vmul.f32 %v306, %v164
    %v308 = vmul.f32 %v307, %v306
    %v309 = vmul.f32 0.5, %v308
    %v310 = vsub.f32 1.5, %v309
    %v311 = vmul.f32 %v306, %v310
    %vm312 = vweird.f32 %v164
    %vm313 = vweird.f32 %v306
    %vm314 = vmor %vm312, %vm313
    %v315 = vsel %vm314, %v306, %v311
    %v316 = vrsqrt.pop %v165
    %v317 = vmul.f32 %v316, %v165
    %v318 = vmul.f32 %v317, %v316
    %v319 = vmul.f32 0.5, %v318
    %v320 = vsub.f32 1.5, %v319
    %v321 = vmul.f32 %v316, %v320
    %vm322 = vweird.f32 %v165
    %vm323 = vweird.f32 %v316
    %vm324 = vmor %vm322, %vm323
    %v325 = vsel %vm324, %v316, %v321
    %v326 = vmul.f32 %v70, %v175
    %v327 = vmul.f32 %v71, %v185
    %v328 = vmul.f32 %v72, %v195
    %v329 = vmul.f32 %v73, %v205
    %v330 = vmul.f32 %v74, %v215
    %v331 = vmul.f32 %v75, %v225
    %v332 = vmul.f32 %v76, %v235
    %v333 = vmul.f32 %v77, %v245
    %v334 = vmul.f32 %v78, %v255
    %v335 = vmul.f32 %v79, %v265
    %v336 = vmul.f32 %v80, %v275
    %v337 = vmul.f32 %v81, %v285
    %v338 = vmul.f32 %v82, %v295
    %v339 = vmul.f32 %v83, %v305
    %v340 = vmul.f32 %v84, %v315
    %v341 = vmul.f32 %v85, %v325
    %v342 = vmul.f32 %v86, %v86
    %v343 = vmul.f32 %v87, %v87
    %v344 = vmul.f32 %v88, %v88
    %v345 = vmul.f32 %v89, %v89
    %v346 = vmul.f32 %v90, %v90
    %v347 = vmul.f32 %v91, %v91
    %v348 = vmul.f32 %v92, %v92
    %v349 = vmul.f32 %v93, %v93
    %v350 = vmul.f32 %v94, %v94
    %v351 = vmul.f32 %v95, %v95
    %v352 = vmul.f32 %v96, %v96
    %v353 = vmul.f32 %v97, %v97
    %v354 = vmul.f32 %v98, %v98
    %v355 = vmul.f32 %v99, %v99
    %v356 = vmul.f32 %v100, %v100
    %v357 = vmul.f32 %v101, %v101
    %358 = vadd.xlane.f32.xlu0 %v342
    %v359 = vpop.xlane.xlu0 %358
    %360 = vadd.xlane.f32.xlu0 %v343
    %v361 = vpop.xlane.xlu0 %360
    %362 = vadd.xlane.f32.xlu0 %v344
    %v363 = vpop.xlane.xlu0 %362
    %364 = vadd.xlane.f32.xlu0 %v345
    %v365 = vpop.xlane.xlu0 %364
    %366 = vadd.xlane.f32.xlu0 %v346
    %v367 = vpop.xlane.xlu0 %366
    %368 = vadd.xlane.f32.xlu0 %v347
    %v369 = vpop.xlane.xlu0 %368
    %370 = vadd.xlane.f32.xlu0 %v348
    %v371 = vpop.xlane.xlu0 %370
    %372 = vadd.xlane.f32.xlu0 %v349
    %v373 = vpop.xlane.xlu0 %372
    %374 = vadd.xlane.f32.xlu0 %v350
    %v375 = vpop.xlane.xlu0 %374
    %376 = vadd.xlane.f32.xlu0 %v351
    %v377 = vpop.xlane.xlu0 %376
    %378 = vadd.xlane.f32.xlu0 %v352
    %v379 = vpop.xlane.xlu0 %378
    %380 = vadd.xlane.f32.xlu0 %v353
    %v381 = vpop.xlane.xlu0 %380
    %382 = vadd.xlane.f32.xlu0 %v354
    %v383 = vpop.xlane.xlu0 %382
    %384 = vadd.xlane.f32.xlu0 %v355
    %v385 = vpop.xlane.xlu0 %384
    %386 = vadd.xlane.f32.xlu0 %v356
    %v387 = vpop.xlane.xlu0 %386
    %388 = vadd.xlane.f32.xlu0 %v357
    %v389 = vpop.xlane.xlu0 %388
    %v390 = vmax.f32 %v359, 1e-24
    %v391 = vmax.f32 %v361, 1e-24
    %v392 = vmax.f32 %v363, 1e-24
    %v393 = vmax.f32 %v365, 1e-24
    %v394 = vmax.f32 %v367, 1e-24
    %v395 = vmax.f32 %v369, 1e-24
    %v396 = vmax.f32 %v371, 1e-24
    %v397 = vmax.f32 %v373, 1e-24
    %v398 = vmax.f32 %v375, 1e-24
    %v399 = vmax.f32 %v377, 1e-24
    %v400 = vmax.f32 %v379, 1e-24
    %v401 = vmax.f32 %v381, 1e-24
    %v402 = vmax.f32 %v383, 1e-24
    %v403 = vmax.f32 %v385, 1e-24
    %v404 = vmax.f32 %v387, 1e-24
    %v405 = vmax.f32 %v389, 1e-24
    %v406 = vrsqrt.pop %v390
    %v407 = vmul.f32 %v406, %v390
    %v408 = vmul.f32 %v407, %v406
    %v409 = vmul.f32 0.5, %v408
    %v410 = vsub.f32 1.5, %v409
    %v411 = vmul.f32 %v406, %v410
    %vm412 = vweird.f32 %v390
    %vm413 = vweird.f32 %v406
    %vm414 = vmor %vm412, %vm413
    %v415 = vsel %vm414, %v406, %v411
    %v416 = vrsqrt.pop %v391
    %v417 = vmul.f32 %v416, %v391
    %v418 = vmul.f32 %v417, %v416
    %v419 = vmul.f32 0.5, %v418
    %v420 = vsub.f32 1.5, %v419
    %v421 = vmul.f32 %v416, %v420
    %vm422 = vweird.f32 %v391
    %vm423 = vweird.f32 %v416
    %vm424 = vmor %vm422, %vm423
    %v425 = vsel %vm424, %v416, %v421
    %v426 = vrsqrt.pop %v392
    %v427 = vmul.f32 %v426, %v392
    %v428 = vmul.f32 %v427, %v426
    %v429 = vmul.f32 0.5, %v428
    %v430 = vsub.f32 1.5, %v429
    %v431 = vmul.f32 %v426, %v430
    %vm432 = vweird.f32 %v392
    %vm433 = vweird.f32 %v426
    %vm434 = vmor %vm432, %vm433
    %v435 = vsel %vm434, %v426, %v431
    %v436 = vrsqrt.pop %v393
    %v437 = vmul.f32 %v436, %v393
    %v438 = vmul.f32 %v437, %v436
    %v439 = vmul.f32 0.5, %v438
    %v440 = vsub.f32 1.5, %v439
    %v441 = vmul.f32 %v436, %v440
    %vm442 = vweird.f32 %v393
    %vm443 = vweird.f32 %v436
    %vm444 = vmor %vm442, %vm443
    %v445 = vsel %vm444, %v436, %v441
    %v446 = vrsqrt.pop %v394
    %v447 = vmul.f32 %v446, %v394
    %v448 = vmul.f32 %v447, %v446
    %v449 = vmul.f32 0.5, %v448
    %v450 = vsub.f32 1.5, %v449
    %v451 = vmul.f32 %v446, %v450
    %vm452 = vweird.f32 %v394
    %vm453 = vweird.f32 %v446
    %vm454 = vmor %vm452, %vm453
    %v455 = vsel %vm454, %v446, %v451
    %v456 = vrsqrt.pop %v395
    %v457 = vmul.f32 %v456, %v395
    %v458 = vmul.f32 %v457, %v456
    %v459 = vmul.f32 0.5, %v458
    %v460 = vsub.f32 1.5, %v459
    %v461 = vmul.f32 %v456, %v460
    %vm462 = vweird.f32 %v395
    %vm463 = vweird.f32 %v456
    %vm464 = vmor %vm462, %vm463
    %v465 = vsel %vm464, %v456, %v461
    %v466 = vrsqrt.pop %v396
    %v467 = vmul.f32 %v466, %v396
    %v468 = vmul.f32 %v467, %v466
    %v469 = vmul.f32 0.5, %v468
    %v470 = vsub.f32 1.5, %v469
    %v471 = vmul.f32 %v466, %v470
    %vm472 = vweird.f32 %v396
    %vm473 = vweird.f32 %v466
    %vm474 = vmor %vm472, %vm473
    %v475 = vsel %vm474, %v466, %v471
    %v476 = vrsqrt.pop %v397
    %v477 = vmul.f32 %v476, %v397
    %v478 = vmul.f32 %v477, %v476
    %v479 = vmul.f32 0.5, %v478
    %v480 = vsub.f32 1.5, %v479
    %v481 = vmul.f32 %v476, %v480
    %vm482 = vweird.f32 %v397
    %vm483 = vweird.f32 %v476
    %vm484 = vmor %vm482, %vm483
    %v485 = vsel %vm484, %v476, %v481
    %v486 = vrsqrt.pop %v398
    %v487 = vmul.f32 %v486, %v398
    %v488 = vmul.f32 %v487, %v486
    %v489 = vmul.f32 0.5, %v488
    %v490 = vsub.f32 1.5, %v489
    %v491 = vmul.f32 %v486, %v490
    %vm492 = vweird.f32 %v398
    %vm493 = vweird.f32 %v486
    %vm494 = vmor %vm492, %vm493
    %v495 = vsel %vm494, %v486, %v491
    %v496 = vrsqrt.pop %v399
    %v497 = vmul.f32 %v496, %v399
    %v498 = vmul.f32 %v497, %v496
    %v499 = vmul.f32 0.5, %v498
    %v500 = vsub.f32 1.5, %v499
    %v501 = vmul.f32 %v496, %v500
    %vm502 = vweird.f32 %v399
    %vm503 = vweird.f32 %v496
    %vm504 = vmor %vm502, %vm503
    %v505 = vsel %vm504, %v496, %v501
    %v506 = vrsqrt.pop %v400
    %v507 = vmul.f32 %v506, %v400
    %v508 = vmul.f32 %v507, %v506
    %v509 = vmul.f32 0.5, %v508
    %v510 = vsub.f32 1.5, %v509
    %v511 = vmul.f32 %v506, %v510
    %vm512 = vweird.f32 %v400
    %vm513 = vweird.f32 %v506
    %vm514 = vmor %vm512, %vm513
    %v515 = vsel %vm514, %v506, %v511
    %v516 = vrsqrt.pop %v401
    %v517 = vmul.f32 %v516, %v401
    %v518 = vmul.f32 %v517, %v516
    %v519 = vmul.f32 0.5, %v518
    %v520 = vsub.f32 1.5, %v519
    %v521 = vmul.f32 %v516, %v520
    %vm522 = vweird.f32 %v401
    %vm523 = vweird.f32 %v516
    %vm524 = vmor %vm522, %vm523
    %v525 = vsel %vm524, %v516, %v521
    %v526 = vrsqrt.pop %v402
    %v527 = vmul.f32 %v526, %v402
    %v528 = vmul.f32 %v527, %v526
    %v529 = vmul.f32 0.5, %v528
    %v530 = vsub.f32 1.5, %v529
    %v531 = vmul.f32 %v526, %v530
    %vm532 = vweird.f32 %v402
    %vm533 = vweird.f32 %v526
    %vm534 = vmor %vm532, %vm533
    %v535 = vsel %vm534, %v526, %v531
    %v536 = vrsqrt.pop %v403
    %v537 = vmul.f32 %v536, %v403
    %v538 = vmul.f32 %v537, %v536
    %v539 = vmul.f32 0.5, %v538
    %v540 = vsub.f32 1.5, %v539
    %v541 = vmul.f32 %v536, %v540
    %vm542 = vweird.f32 %v403
    %vm543 = vweird.f32 %v536
    %vm544 = vmor %vm542, %vm543
    %v545 = vsel %vm544, %v536, %v541
    %v546 = vrsqrt.pop %v404
    %v547 = vmul.f32 %v546, %v404
    %v548 = vmul.f32 %v547, %v546
    %v549 = vmul.f32 0.5, %v548
    %v550 = vsub.f32 1.5, %v549
    %v551 = vmul.f32 %v546, %v550
    %vm552 = vweird.f32 %v404
    %vm553 = vweird.f32 %v546
    %vm554 = vmor %vm552, %vm553
    %v555 = vsel %vm554, %v546, %v551
    %v556 = vrsqrt.pop %v405
    %v557 = vmul.f32 %v556, %v405
    %v558 = vmul.f32 %v557, %v556
    %v559 = vmul.f32 0.5, %v558
    %v560 = vsub.f32 1.5, %v559
    %v561 = vmul.f32 %v556, %v560
    %vm562 = vweird.f32 %v405
    %vm563 = vweird.f32 %v556
    %vm564 = vmor %vm562, %vm563
    %v565 = vsel %vm564, %v556, %v561
    %v566 = vmul.f32 %v86, %v415
    %v567 = vmul.f32 %v87, %v425
    %v568 = vmul.f32 %v88, %v435
    %v569 = vmul.f32 %v89, %v445
    %v570 = vmul.f32 %v90, %v455
    %v571 = vmul.f32 %v91, %v465
    %v572 = vmul.f32 %v92, %v475
    %v573 = vmul.f32 %v93, %v485
    %v574 = vmul.f32 %v94, %v495
    %v575 = vmul.f32 %v95, %v505
    %v576 = vmul.f32 %v96, %v515
    %v577 = vmul.f32 %v97, %v525
    %v578 = vmul.f32 %v98, %v535
    %v579 = vmul.f32 %v99, %v545
    %v580 = vmul.f32 %v100, %v555
    %v581 = vmul.f32 %v101, %v565
    %582 = vmatpush.xpose.msra.mxu0 %v581
    %583 = vmatpush.xpose.msra.mxu0 %v580
    %584 = vmatpush.xpose.msra.mxu0 %v579
    %585 = vmatpush.xpose.msra.mxu0 %v578
    %586 = vmatpush.xpose.msra.mxu0 %v577
    %587 = vmatpush.xpose.msra.mxu0 %v576
    %588 = vmatpush.xpose.msra.mxu0 %v575
    %589 = vmatpush.xpose.msra.mxu0 %v574
    %590 = vmatpush.xpose.msra.mxu0 %v573
    %591 = vmatpush.xpose.msra.mxu0 %v572
    %592 = vmatpush.xpose.msra.mxu0 %v571
    %593 = vmatpush.xpose.msra.mxu0 %v570
    %594 = vmatpush.xpose.msra.mxu0 %v569
    %595 = vmatpush.xpose.msra.mxu0 %v568
    %596 = vmatpush.xpose.msra.mxu0 %v567
    %597 = vmatpush.xpose.msra.mxu0 %v566
    %598 = vmatmul.f32.gmra.mxu0 %v326
    %v599 = vpop.f32.mrf.mxu0
    %v600 = vadd.f32 0.0, %v599
    %601 = vmatmul.f32.gmra.mxu0 %v327
    %v602 = vpop.f32.mrf.mxu0
    %v603 = vadd.f32 0.0, %v602
    %604 = vmatmul.f32.gmra.mxu0 %v328
    %v605 = vpop.f32.mrf.mxu0
    %v606 = vadd.f32 0.0, %v605
    %607 = vmatmul.f32.gmra.mxu0 %v329
    %v608 = vpop.f32.mrf.mxu0
    %v609 = vadd.f32 0.0, %v608
    %610 = vmatmul.f32.gmra.mxu0 %v330
    %v611 = vpop.f32.mrf.mxu0
    %v612 = vadd.f32 0.0, %v611
    %613 = vmatmul.f32.gmra.mxu0 %v331
    %v614 = vpop.f32.mrf.mxu0
    %v615 = vadd.f32 0.0, %v614
    %616 = vmatmul.f32.gmra.mxu0 %v332
    %v617 = vpop.f32.mrf.mxu0
    %v618 = vadd.f32 0.0, %v617
    %619 = vmatmul.f32.gmra.mxu0 %v333
    %v620 = vpop.f32.mrf.mxu0
    %v621 = vadd.f32 0.0, %v620
    %622 = vmatmul.f32.gmra.mxu0 %v334
    %v623 = vpop.f32.mrf.mxu0
    %v624 = vadd.f32 0.0, %v623
    %625 = vmatmul.f32.gmra.mxu0 %v335
    %v626 = vpop.f32.mrf.mxu0
    %v627 = vadd.f32 0.0, %v626
    %628 = vmatmul.f32.gmra.mxu0 %v336
    %v629 = vpop.f32.mrf.mxu0
    %v630 = vadd.f32 0.0, %v629
    %631 = vmatmul.f32.gmra.mxu0 %v337
    %v632 = vpop.f32.mrf.mxu0
    %v633 = vadd.f32 0.0, %v632
    %634 = vmatmul.f32.gmra.mxu0 %v338
    %v635 = vpop.f32.mrf.mxu0
    %v636 = vadd.f32 0.0, %v635
    %637 = vmatmul.f32.gmra.mxu0 %v339
    %v638 = vpop.f32.mrf.mxu0
    %v639 = vadd.f32 0.0, %v638
    %640 = vmatmul.f32.gmra.mxu0 %v340
    %v641 = vpop.f32.mrf.mxu0
    %v642 = vadd.f32 0.0, %v641
    %643 = vmatmul.f32.gmra.mxu0 %v341
    %v644 = vpop.f32.mrf.mxu0
    %v645 = vadd.f32 0.0, %v644
    %646 = vdwg.mxu0
    %v647 = vmul.f32 %v600, 2.0
    %v648 = vmul.f32 %v603, 2.0
    %v649 = vmul.f32 %v606, 2.0
    %v650 = vmul.f32 %v609, 2.0
    %v651 = vmul.f32 %v612, 2.0
    %v652 = vmul.f32 %v615, 2.0
    %v653 = vmul.f32 %v618, 2.0
    %v654 = vmul.f32 %v621, 2.0
    %v655 = vmul.f32 %v624, 2.0
    %v656 = vmul.f32 %v627, 2.0
    %v657 = vmul.f32 %v630, 2.0
    %v658 = vmul.f32 %v633, 2.0
    %v659 = vmul.f32 %v636, 2.0
    %v660 = vmul.f32 %v639, 2.0
    %v661 = vmul.f32 %v642, 2.0
    %v662 = vmul.f32 %v645, 2.0
    %v663 = vsub.f32 2.0, %v647
    %v664 = vsub.f32 2.0, %v648
    %v665 = vsub.f32 2.0, %v649
    %v666 = vsub.f32 2.0, %v650
    %v667 = vsub.f32 2.0, %v651
    %v668 = vsub.f32 2.0, %v652
    %v669 = vsub.f32 2.0, %v653
    %v670 = vsub.f32 2.0, %v654
    %v671 = vsub.f32 2.0, %v655
    %v672 = vsub.f32 2.0, %v656
    %v673 = vsub.f32 2.0, %v657
    %v674 = vsub.f32 2.0, %v658
    %v675 = vsub.f32 2.0, %v659
    %v676 = vsub.f32 2.0, %v660
    %v677 = vsub.f32 2.0, %v661
    %v678 = vsub.f32 2.0, %v662
    %v679 = vmax.f32 %v663, 0.0
    %v680 = vmax.f32 %v664, 0.0
    %v681 = vmax.f32 %v665, 0.0
    %v682 = vmax.f32 %v666, 0.0
    %v683 = vmax.f32 %v667, 0.0
    %v684 = vmax.f32 %v668, 0.0
    %v685 = vmax.f32 %v669, 0.0
    %v686 = vmax.f32 %v670, 0.0
    %v687 = vmax.f32 %v671, 0.0
    %v688 = vmax.f32 %v672, 0.0
    %v689 = vmax.f32 %v673, 0.0
    %v690 = vmax.f32 %v674, 0.0
    %v691 = vmax.f32 %v675, 0.0
    %v692 = vmax.f32 %v676, 0.0
    %v693 = vmax.f32 %v677, 0.0
    %v694 = vmax.f32 %v678, 0.0
    %v695 = vrsqrt.pop %v679
    %v696 = vmul.f32 %v695, %v679
    %v697 = vmul.f32 %v696, %v695
    %v698 = vmul.f32 0.5, %v697
    %v699 = vsub.f32 1.5, %v698
    %v700 = vmul.f32 %v695, %v699
    %v701 = vmul.f32 %v679, %v700
    %vm702 = vcmp.eq.f32.partialorder %v679, inf
    %v703 = vsel %vm702, %v679, %v701
    %vm704 = vcmp.eq.f32.partialorder %v679, 0.0
    %v705 = vand.u32 %v679, 2147483648
    %v706 = vsel %vm704, %v705, %v703
    %v707 = vrsqrt.pop %v680
    %v708 = vmul.f32 %v707, %v680
    %v709 = vmul.f32 %v708, %v707
    %v710 = vmul.f32 0.5, %v709
    %v711 = vsub.f32 1.5, %v710
    %v712 = vmul.f32 %v707, %v711
    %v713 = vmul.f32 %v680, %v712
    %vm714 = vcmp.eq.f32.partialorder %v680, inf
    %v715 = vsel %vm714, %v680, %v713
    %vm716 = vcmp.eq.f32.partialorder %v680, 0.0
    %v717 = vand.u32 %v680, 2147483648
    %v718 = vsel %vm716, %v717, %v715
    %v719 = vrsqrt.pop %v681
    %v720 = vmul.f32 %v719, %v681
    %v721 = vmul.f32 %v720, %v719
    %v722 = vmul.f32 0.5, %v721
    %v723 = vsub.f32 1.5, %v722
    %v724 = vmul.f32 %v719, %v723
    %v725 = vmul.f32 %v681, %v724
    %vm726 = vcmp.eq.f32.partialorder %v681, inf
    %v727 = vsel %vm726, %v681, %v725
    %vm728 = vcmp.eq.f32.partialorder %v681, 0.0
    %v729 = vand.u32 %v681, 2147483648
    %v730 = vsel %vm728, %v729, %v727
    %v731 = vrsqrt.pop %v682
    %v732 = vmul.f32 %v731, %v682
    %v733 = vmul.f32 %v732, %v731
    %v734 = vmul.f32 0.5, %v733
    %v735 = vsub.f32 1.5, %v734
    %v736 = vmul.f32 %v731, %v735
    %v737 = vmul.f32 %v682, %v736
    %vm738 = vcmp.eq.f32.partialorder %v682, inf
    %v739 = vsel %vm738, %v682, %v737
    %vm740 = vcmp.eq.f32.partialorder %v682, 0.0
    %v741 = vand.u32 %v682, 2147483648
    %v742 = vsel %vm740, %v741, %v739
    %v743 = vrsqrt.pop %v683
    %v744 = vmul.f32 %v743, %v683
    %v745 = vmul.f32 %v744, %v743
    %v746 = vmul.f32 0.5, %v745
    %v747 = vsub.f32 1.5, %v746
    %v748 = vmul.f32 %v743, %v747
    %v749 = vmul.f32 %v683, %v748
    %vm750 = vcmp.eq.f32.partialorder %v683, inf
    %v751 = vsel %vm750, %v683, %v749
    %vm752 = vcmp.eq.f32.partialorder %v683, 0.0
    %v753 = vand.u32 %v683, 2147483648
    %v754 = vsel %vm752, %v753, %v751
    %v755 = vrsqrt.pop %v684
    %v756 = vmul.f32 %v755, %v684
    %v757 = vmul.f32 %v756, %v755
    %v758 = vmul.f32 0.5, %v757
    %v759 = vsub.f32 1.5, %v758
    %v760 = vmul.f32 %v755, %v759
    %v761 = vmul.f32 %v684, %v760
    %vm762 = vcmp.eq.f32.partialorder %v684, inf
    %v763 = vsel %vm762, %v684, %v761
    %vm764 = vcmp.eq.f32.partialorder %v684, 0.0
    %v765 = vand.u32 %v684, 2147483648
    %v766 = vsel %vm764, %v765, %v763
    %v767 = vrsqrt.pop %v685
    %v768 = vmul.f32 %v767, %v685
    %v769 = vmul.f32 %v768, %v767
    %v770 = vmul.f32 0.5, %v769
    %v771 = vsub.f32 1.5, %v770
    %v772 = vmul.f32 %v767, %v771
    %v773 = vmul.f32 %v685, %v772
    %vm774 = vcmp.eq.f32.partialorder %v685, inf
    %v775 = vsel %vm774, %v685, %v773
    %vm776 = vcmp.eq.f32.partialorder %v685, 0.0
    %v777 = vand.u32 %v685, 2147483648
    %v778 = vsel %vm776, %v777, %v775
    %v779 = vrsqrt.pop %v686
    %v780 = vmul.f32 %v779, %v686
    %v781 = vmul.f32 %v780, %v779
    %v782 = vmul.f32 0.5, %v781
    %v783 = vsub.f32 1.5, %v782
    %v784 = vmul.f32 %v779, %v783
    %v785 = vmul.f32 %v686, %v784
    %vm786 = vcmp.eq.f32.partialorder %v686, inf
    %v787 = vsel %vm786, %v686, %v785
    %vm788 = vcmp.eq.f32.partialorder %v686, 0.0
    %v789 = vand.u32 %v686, 2147483648
    %v790 = vsel %vm788, %v789, %v787
    %v791 = vrsqrt.pop %v687
    %v792 = vmul.f32 %v791, %v687
    %v793 = vmul.f32 %v792, %v791
    %v794 = vmul.f32 0.5, %v793
    %v795 = vsub.f32 1.5, %v794
    %v796 = vmul.f32 %v791, %v795
    %v797 = vmul.f32 %v687, %v796
    %vm798 = vcmp.eq.f32.partialorder %v687, inf
    %v799 = vsel %vm798, %v687, %v797
    %vm800 = vcmp.eq.f32.partialorder %v687, 0.0
    %v801 = vand.u32 %v687, 2147483648
    %v802 = vsel %vm800, %v801, %v799
    %v803 = vrsqrt.pop %v688
    %v804 = vmul.f32 %v803, %v688
    %v805 = vmul.f32 %v804, %v803
    %v806 = vmul.f32 0.5, %v805
    %v807 = vsub.f32 1.5, %v806
    %v808 = vmul.f32 %v803, %v807
    %v809 = vmul.f32 %v688, %v808
    %vm810 = vcmp.eq.f32.partialorder %v688, inf
    %v811 = vsel %vm810, %v688, %v809
    %vm812 = vcmp.eq.f32.partialorder %v688, 0.0
    %v813 = vand.u32 %v688, 2147483648
    %v814 = vsel %vm812, %v813, %v811
    %v815 = vrsqrt.pop %v689
    %v816 = vmul.f32 %v815, %v689
    %v817 = vmul.f32 %v816, %v815
    %v818 = vmul.f32 0.5, %v817
    %v819 = vsub.f32 1.5, %v818
    %v820 = vmul.f32 %v815, %v819
    %v821 = vmul.f32 %v689, %v820
    %vm822 = vcmp.eq.f32.partialorder %v689, inf
    %v823 = vsel %vm822, %v689, %v821
    %vm824 = vcmp.eq.f32.partialorder %v689, 0.0
    %v825 = vand.u32 %v689, 2147483648
    %v826 = vsel %vm824, %v825, %v823
    %v827 = vrsqrt.pop %v690
    %v828 = vmul.f32 %v827, %v690
    %v829 = vmul.f32 %v828, %v827
    %v830 = vmul.f32 0.5, %v829
    %v831 = vsub.f32 1.5, %v830
    %v832 = vmul.f32 %v827, %v831
    %v833 = vmul.f32 %v690, %v832
    %vm834 = vcmp.eq.f32.partialorder %v690, inf
    %v835 = vsel %vm834, %v690, %v833
    %vm836 = vcmp.eq.f32.partialorder %v690, 0.0
    %v837 = vand.u32 %v690, 2147483648
    %v838 = vsel %vm836, %v837, %v835
    %v839 = vrsqrt.pop %v691
    %v840 = vmul.f32 %v839, %v691
    %v841 = vmul.f32 %v840, %v839
    %v842 = vmul.f32 0.5, %v841
    %v843 = vsub.f32 1.5, %v842
    %v844 = vmul.f32 %v839, %v843
    %v845 = vmul.f32 %v691, %v844
    %vm846 = vcmp.eq.f32.partialorder %v691, inf
    %v847 = vsel %vm846, %v691, %v845
    %vm848 = vcmp.eq.f32.partialorder %v691, 0.0
    %v849 = vand.u32 %v691, 2147483648
    %v850 = vsel %vm848, %v849, %v847
    %v851 = vrsqrt.pop %v692
    %v852 = vmul.f32 %v851, %v692
    %v853 = vmul.f32 %v852, %v851
    %v854 = vmul.f32 0.5, %v853
    %v855 = vsub.f32 1.5, %v854
    %v856 = vmul.f32 %v851, %v855
    %v857 = vmul.f32 %v692, %v856
    %vm858 = vcmp.eq.f32.partialorder %v692, inf
    %v859 = vsel %vm858, %v692, %v857
    %vm860 = vcmp.eq.f32.partialorder %v692, 0.0
    %v861 = vand.u32 %v692, 2147483648
    %v862 = vsel %vm860, %v861, %v859
    %v863 = vrsqrt.pop %v693
    %v864 = vmul.f32 %v863, %v693
    %v865 = vmul.f32 %v864, %v863
    %v866 = vmul.f32 0.5, %v865
    %v867 = vsub.f32 1.5, %v866
    %v868 = vmul.f32 %v863, %v867
    %v869 = vmul.f32 %v693, %v868
    %vm870 = vcmp.eq.f32.partialorder %v693, inf
    %v871 = vsel %vm870, %v693, %v869
    %vm872 = vcmp.eq.f32.partialorder %v693, 0.0
    %v873 = vand.u32 %v693, 2147483648
    %v874 = vsel %vm872, %v873, %v871
    %v875 = vrsqrt.pop %v694
    %v876 = vmul.f32 %v875, %v694
    %v877 = vmul.f32 %v876, %v875
    %v878 = vmul.f32 0.5, %v877
    %v879 = vsub.f32 1.5, %v878
    %v880 = vmul.f32 %v875, %v879
    %v881 = vmul.f32 %v694, %v880
    %vm882 = vcmp.eq.f32.partialorder %v694, inf
    %v883 = vsel %vm882, %v694, %v881
    %vm884 = vcmp.eq.f32.partialorder %v694, 0.0
    %v885 = vand.u32 %v694, 2147483648
    %v886 = vsel %vm884, %v885, %v883
    %v887 = vld [vmem:[%s2] sm:$0xff]
    %v888 = vld [vmem:[%s2 + $0x8] sm:$0xff]
    %v889 = vld [vmem:[%s2 + $0x10] sm:$0xff]
    %v890 = vld [vmem:[%s2 + $0x18] sm:$0xff]
    %v891 = vld [vmem:[%s2 + $0x20] sm:$0xff]
    %v892 = vld [vmem:[%s2 + $0x28] sm:$0xff]
    %v893 = vld [vmem:[%s2 + $0x30] sm:$0xff]
    %v894 = vld [vmem:[%s2 + $0x38] sm:$0xff]
    %v895 = vld [vmem:[%s2 + $0x40] sm:$0xff]
    %v896 = vld [vmem:[%s2 + $0x48] sm:$0xff]
    %v897 = vld [vmem:[%s2 + $0x50] sm:$0xff]
    %v898 = vld [vmem:[%s2 + $0x58] sm:$0xff]
    %v899 = vld [vmem:[%s2 + $0x60] sm:$0xff]
    %v900 = vld [vmem:[%s2 + $0x68] sm:$0xff]
    %v901 = vld [vmem:[%s2 + $0x70] sm:$0xff]
    %v902 = vld [vmem:[%s2 + $0x78] sm:$0xff]
    %v903 = vld [vmem:[%s3] sm:$0x1]
    %904 = vset.pattern.permute.xlu0 0
    %905 = vperm.xlu0 %904, %v887
    %v906 = vpop.permute.xlu0 %905
    %907 = vset.pattern.permute.xlu0 0
    %908 = vperm.xlu0 %907, %v888
    %v909 = vpop.permute.xlu0 %908
    %910 = vset.pattern.permute.xlu0 0
    %911 = vperm.xlu0 %910, %v889
    %v912 = vpop.permute.xlu0 %911
    %913 = vset.pattern.permute.xlu0 0
    %914 = vperm.xlu0 %913, %v890
    %v915 = vpop.permute.xlu0 %914
    %916 = vset.pattern.permute.xlu0 0
    %917 = vperm.xlu0 %916, %v891
    %v918 = vpop.permute.xlu0 %917
    %919 = vset.pattern.permute.xlu0 0
    %920 = vperm.xlu0 %919, %v892
    %v921 = vpop.permute.xlu0 %920
    %922 = vset.pattern.permute.xlu0 0
    %923 = vperm.xlu0 %922, %v893
    %v924 = vpop.permute.xlu0 %923
    %925 = vset.pattern.permute.xlu0 0
    %926 = vperm.xlu0 %925, %v894
    %v927 = vpop.permute.xlu0 %926
    %928 = vset.pattern.permute.xlu0 0
    %929 = vperm.xlu0 %928, %v895
    %v930 = vpop.permute.xlu0 %929
    %931 = vset.pattern.permute.xlu0 0
    %932 = vperm.xlu0 %931, %v896
    %v933 = vpop.permute.xlu0 %932
    %934 = vset.pattern.permute.xlu0 0
    %935 = vperm.xlu0 %934, %v897
    %v936 = vpop.permute.xlu0 %935
    %937 = vset.pattern.permute.xlu0 0
    %938 = vperm.xlu0 %937, %v898
    %v939 = vpop.permute.xlu0 %938
    %940 = vset.pattern.permute.xlu0 0
    %941 = vperm.xlu0 %940, %v899
    %v942 = vpop.permute.xlu0 %941
    %943 = vset.pattern.permute.xlu0 0
    %944 = vperm.xlu0 %943, %v900
    %v945 = vpop.permute.xlu0 %944
    %946 = vset.pattern.permute.xlu0 0
    %947 = vperm.xlu0 %946, %v901
    %v948 = vpop.permute.xlu0 %947
    %949 = vset.pattern.permute.xlu0 0
    %950 = vperm.xlu0 %949, %v902
    %v951 = vpop.permute.xlu0 %950
    %v952 = vperm.slane %v903, 0
    %vm953 = vcmp.eq.s32.totalorder %v906, %v952
    %vm954 = vcmp.eq.s32.totalorder %v909, %v952
    %vm955 = vcmp.eq.s32.totalorder %v912, %v952
    %vm956 = vcmp.eq.s32.totalorder %v915, %v952
    %vm957 = vcmp.eq.s32.totalorder %v918, %v952
    %vm958 = vcmp.eq.s32.totalorder %v921, %v952
    %vm959 = vcmp.eq.s32.totalorder %v924, %v952
    %vm960 = vcmp.eq.s32.totalorder %v927, %v952
    %vm961 = vcmp.eq.s32.totalorder %v930, %v952
    %vm962 = vcmp.eq.s32.totalorder %v933, %v952
    %vm963 = vcmp.eq.s32.totalorder %v936, %v952
    %vm964 = vcmp.eq.s32.totalorder %v939, %v952
    %vm965 = vcmp.eq.s32.totalorder %v942, %v952
    %vm966 = vcmp.eq.s32.totalorder %v945, %v952
    %vm967 = vcmp.eq.s32.totalorder %v948, %v952
    %vm968 = vcmp.eq.s32.totalorder %v951, %v952
    %s969 = smul.u32 0, 128
    %v970 = vlaneseq
    %v971 = vand.u32 %v970, 127
    %v972 = vstv %s969
    %v973 = vadd.s32 %v972, %v971
    %vm974 = vcmp.lt.s32.totalorder %v973, 8
    %v975 = vsel %vm974, 1, 0
    %vm976 = vcmp.eq.s32.totalorder %v975, 1
    %vm977 = vmand %vm953, %vm976
    %vm978 = vmand %vm954, %vm976
    %vm979 = vmand %vm955, %vm976
    %vm980 = vmand %vm956, %vm976
    %vm981 = vmand %vm957, %vm976
    %vm982 = vmand %vm958, %vm976
    %vm983 = vmand %vm959, %vm976
    %vm984 = vmand %vm960, %vm976
    %vm985 = vmand %vm961, %vm976
    %vm986 = vmand %vm962, %vm976
    %vm987 = vmand %vm963, %vm976
    %vm988 = vmand %vm964, %vm976
    %vm989 = vmand %vm965, %vm976
    %vm990 = vmand %vm966, %vm976
    %vm991 = vmand %vm967, %vm976
    %vm992 = vmand %vm968, %vm976
    %v993 = vsel %vm977, %v706, -1e+08
    %v994 = vsel %vm978, %v718, -1e+08
    %v995 = vsel %vm979, %v730, -1e+08
    %v996 = vsel %vm980, %v742, -1e+08
    %v997 = vsel %vm981, %v754, -1e+08
    %v998 = vsel %vm982, %v766, -1e+08
    %v999 = vsel %vm983, %v778, -1e+08
    %v1000 = vsel %vm984, %v790, -1e+08
    %v1001 = vsel %vm985, %v802, -1e+08
    %v1002 = vsel %vm986, %v814, -1e+08
    %v1003 = vsel %vm987, %v826, -1e+08
    %v1004 = vsel %vm988, %v838, -1e+08
    %v1005 = vsel %vm989, %v850, -1e+08
    %v1006 = vsel %vm990, %v862, -1e+08
    %v1007 = vsel %vm991, %v874, -1e+08
    %v1008 = vsel %vm992, %v886, -1e+08
    %vm1009 = vmxor %vm974, 1
    %v1010 = vsel %vm1009, 1, 0
    %vm1011 = vcmp.eq.s32.totalorder %v1010, 1
    %vm1012 = vmor %vm953, %vm1011
    %vm1013 = vmor %vm954, %vm1011
    %vm1014 = vmor %vm955, %vm1011
    %vm1015 = vmor %vm956, %vm1011
    %vm1016 = vmor %vm957, %vm1011
    %vm1017 = vmor %vm958, %vm1011
    %vm1018 = vmor %vm959, %vm1011
    %vm1019 = vmor %vm960, %vm1011
    %vm1020 = vmor %vm961, %vm1011
    %vm1021 = vmor %vm962, %vm1011
    %vm1022 = vmor %vm963, %vm1011
    %vm1023 = vmor %vm964, %vm1011
    %vm1024 = vmor %vm965, %vm1011
    %vm1025 = vmor %vm966, %vm1011
    %vm1026 = vmor %vm967, %vm1011
    %vm1027 = vmor %vm968, %vm1011
    %v1028 = vsel %vm1012, 1e+08, %v706
    %v1029 = vsel %vm1013, 1e+08, %v718
    %v1030 = vsel %vm1014, 1e+08, %v730
    %v1031 = vsel %vm1015, 1e+08, %v742
    %v1032 = vsel %vm1016, 1e+08, %v754
    %v1033 = vsel %vm1017, 1e+08, %v766
    %v1034 = vsel %vm1018, 1e+08, %v778
    %v1035 = vsel %vm1019, 1e+08, %v790
    %v1036 = vsel %vm1020, 1e+08, %v802
    %v1037 = vsel %vm1021, 1e+08, %v814
    %v1038 = vsel %vm1022, 1e+08, %v826
    %v1039 = vsel %vm1023, 1e+08, %v838
    %v1040 = vsel %vm1024, 1e+08, %v850
    %v1041 = vsel %vm1025, 1e+08, %v862
    %v1042 = vsel %vm1026, 1e+08, %v874
    %v1043 = vsel %vm1027, 1e+08, %v886
    %v1044 = vld [vmem:[#allocation2] sm:$0xff]
    %v1045 = vld [vmem:[#allocation2 + $0x8] sm:$0xff]
    %v1046 = vld [vmem:[#allocation2 + $0x10] sm:$0xff]
    %v1047 = vld [vmem:[#allocation2 + $0x18] sm:$0xff]
    %v1048 = vld [vmem:[#allocation2 + $0x20] sm:$0xff]
    %v1049 = vld [vmem:[#allocation2 + $0x28] sm:$0xff]
    %v1050 = vld [vmem:[#allocation2 + $0x30] sm:$0xff]
    %v1051 = vld [vmem:[#allocation2 + $0x38] sm:$0xff]
    %v1052 = vld [vmem:[#allocation2 + $0x40] sm:$0xff]
    %v1053 = vld [vmem:[#allocation2 + $0x48] sm:$0xff]
    %v1054 = vld [vmem:[#allocation2 + $0x50] sm:$0xff]
    %v1055 = vld [vmem:[#allocation2 + $0x58] sm:$0xff]
    %v1056 = vld [vmem:[#allocation2 + $0x60] sm:$0xff]
    %v1057 = vld [vmem:[#allocation2 + $0x68] sm:$0xff]
    %v1058 = vld [vmem:[#allocation2 + $0x70] sm:$0xff]
    %v1059 = vld [vmem:[#allocation2 + $0x78] sm:$0xff]
    %1060 = vmax.xlane.f32.xlu0 %v993
    %v1061 = vpop.xlane.xlu0 %1060
    %1062 = vmax.xlane.f32.xlu0 %v994
    %v1063 = vpop.xlane.xlu0 %1062
    %1064 = vmax.xlane.f32.xlu0 %v995
    %v1065 = vpop.xlane.xlu0 %1064
    %1066 = vmax.xlane.f32.xlu0 %v996
    %v1067 = vpop.xlane.xlu0 %1066
    %1068 = vmax.xlane.f32.xlu0 %v997
    %v1069 = vpop.xlane.xlu0 %1068
    %1070 = vmax.xlane.f32.xlu0 %v998
    %v1071 = vpop.xlane.xlu0 %1070
    %1072 = vmax.xlane.f32.xlu0 %v999
    %v1073 = vpop.xlane.xlu0 %1072
    %1074 = vmax.xlane.f32.xlu0 %v1000
    %v1075 = vpop.xlane.xlu0 %1074
    %1076 = vmax.xlane.f32.xlu0 %v1001
    %v1077 = vpop.xlane.xlu0 %1076
    %1078 = vmax.xlane.f32.xlu0 %v1002
    %v1079 = vpop.xlane.xlu0 %1078
    %1080 = vmax.xlane.f32.xlu0 %v1003
    %v1081 = vpop.xlane.xlu0 %1080
    %1082 = vmax.xlane.f32.xlu0 %v1004
    %v1083 = vpop.xlane.xlu0 %1082
    %1084 = vmax.xlane.f32.xlu0 %v1005
    %v1085 = vpop.xlane.xlu0 %1084
    %1086 = vmax.xlane.f32.xlu0 %v1006
    %v1087 = vpop.xlane.xlu0 %1086
    %1088 = vmax.xlane.f32.xlu0 %v1007
    %v1089 = vpop.xlane.xlu0 %1088
    %1090 = vmax.xlane.f32.xlu0 %v1008
    %v1091 = vpop.xlane.xlu0 %1090
    %v1092 = vmax.f32 %v1044, %v1061
    %v1093 = vmax.f32 %v1045, %v1063
    %v1094 = vmax.f32 %v1046, %v1065
    %v1095 = vmax.f32 %v1047, %v1067
    %v1096 = vmax.f32 %v1048, %v1069
    %v1097 = vmax.f32 %v1049, %v1071
    %v1098 = vmax.f32 %v1050, %v1073
    %v1099 = vmax.f32 %v1051, %v1075
    %v1100 = vmax.f32 %v1052, %v1077
    %v1101 = vmax.f32 %v1053, %v1079
    %v1102 = vmax.f32 %v1054, %v1081
    %v1103 = vmax.f32 %v1055, %v1083
    %v1104 = vmax.f32 %v1056, %v1085
    %v1105 = vmax.f32 %v1057, %v1087
    %v1106 = vmax.f32 %v1058, %v1089
    %v1107 = vmax.f32 %v1059, %v1091
    %vm1108 = vcmask 7168
    %1109 = vst.msk [vmem:[#allocation2] sm:$0xff] %vm1108, %v1092
    %1110 = vst.msk [vmem:[#allocation2 + $0x8] sm:$0xff] %vm1108, %v1093
    %1111 = vst.msk [vmem:[#allocation2 + $0x10] sm:$0xff] %vm1108, %v1094
    %1112 = vst.msk [vmem:[#allocation2 + $0x18] sm:$0xff] %vm1108, %v1095
    %1113 = vst.msk [vmem:[#allocation2 + $0x20] sm:$0xff] %vm1108, %v1096
    %1114 = vst.msk [vmem:[#allocation2 + $0x28] sm:$0xff] %vm1108, %v1097
    %1115 = vst.msk [vmem:[#allocation2 + $0x30] sm:$0xff] %vm1108, %v1098
    %1116 = vst.msk [vmem:[#allocation2 + $0x38] sm:$0xff] %vm1108, %v1099
    %1117 = vst.msk [vmem:[#allocation2 + $0x40] sm:$0xff] %vm1108, %v1100
    %1118 = vst.msk [vmem:[#allocation2 + $0x48] sm:$0xff] %vm1108, %v1101
    %1119 = vst.msk [vmem:[#allocation2 + $0x50] sm:$0xff] %vm1108, %v1102
    %1120 = vst.msk [vmem:[#allocation2 + $0x58] sm:$0xff] %vm1108, %v1103
    %1121 = vst.msk [vmem:[#allocation2 + $0x60] sm:$0xff] %vm1108, %v1104
    %1122 = vst.msk [vmem:[#allocation2 + $0x68] sm:$0xff] %vm1108, %v1105
    %1123 = vst.msk [vmem:[#allocation2 + $0x70] sm:$0xff] %vm1108, %v1106
    %1124 = vst.msk [vmem:[#allocation2 + $0x78] sm:$0xff] %vm1108, %v1107
    %v1125 = vld [vmem:[#allocation3] sm:$0xff]
    %v1126 = vld [vmem:[#allocation3 + $0x8] sm:$0xff]
    %v1127 = vld [vmem:[#allocation3 + $0x10] sm:$0xff]
    %v1128 = vld [vmem:[#allocation3 + $0x18] sm:$0xff]
    %v1129 = vld [vmem:[#allocation3 + $0x20] sm:$0xff]
    %v1130 = vld [vmem:[#allocation3 + $0x28] sm:$0xff]
    %v1131 = vld [vmem:[#allocation3 + $0x30] sm:$0xff]
    %v1132 = vld [vmem:[#allocation3 + $0x38] sm:$0xff]
    %v1133 = vld [vmem:[#allocation3 + $0x40] sm:$0xff]
    %v1134 = vld [vmem:[#allocation3 + $0x48] sm:$0xff]
    %v1135 = vld [vmem:[#allocation3 + $0x50] sm:$0xff]
    %v1136 = vld [vmem:[#allocation3 + $0x58] sm:$0xff]
    %v1137 = vld [vmem:[#allocation3 + $0x60] sm:$0xff]
    %v1138 = vld [vmem:[#allocation3 + $0x68] sm:$0xff]
    %v1139 = vld [vmem:[#allocation3 + $0x70] sm:$0xff]
    %v1140 = vld [vmem:[#allocation3 + $0x78] sm:$0xff]
    %1141 = vmin.xlane.f32.xlu0 %v1028
    %v1142 = vpop.xlane.xlu0 %1141
    %1143 = vmin.xlane.f32.xlu0 %v1029
    %v1144 = vpop.xlane.xlu0 %1143
    %1145 = vmin.xlane.f32.xlu0 %v1030
    %v1146 = vpop.xlane.xlu0 %1145
    %1147 = vmin.xlane.f32.xlu0 %v1031
    %v1148 = vpop.xlane.xlu0 %1147
    %1149 = vmin.xlane.f32.xlu0 %v1032
    %v1150 = vpop.xlane.xlu0 %1149
    %1151 = vmin.xlane.f32.xlu0 %v1033
    %v1152 = vpop.xlane.xlu0 %1151
    %1153 = vmin.xlane.f32.xlu0 %v1034
    %v1154 = vpop.xlane.xlu0 %1153
    %1155 = vmin.xlane.f32.xlu0 %v1035
    %v1156 = vpop.xlane.xlu0 %1155
    %1157 = vmin.xlane.f32.xlu0 %v1036
    %v1158 = vpop.xlane.xlu0 %1157
    %1159 = vmin.xlane.f32.xlu0 %v1037
    %v1160 = vpop.xlane.xlu0 %1159
    %1161 = vmin.xlane.f32.xlu0 %v1038
    %v1162 = vpop.xlane.xlu0 %1161
    %1163 = vmin.xlane.f32.xlu0 %v1039
    %v1164 = vpop.xlane.xlu0 %1163
    %1165 = vmin.xlane.f32.xlu0 %v1040
    %v1166 = vpop.xlane.xlu0 %1165
    %1167 = vmin.xlane.f32.xlu0 %v1041
    %v1168 = vpop.xlane.xlu0 %1167
    %1169 = vmin.xlane.f32.xlu0 %v1042
    %v1170 = vpop.xlane.xlu0 %1169
    %1171 = vmin.xlane.f32.xlu0 %v1043
    %v1172 = vpop.xlane.xlu0 %1171
    %v1173 = vmin.f32 %v1125, %v1142
    %v1174 = vmin.f32 %v1126, %v1144
    %v1175 = vmin.f32 %v1127, %v1146
    %v1176 = vmin.f32 %v1128, %v1148
    %v1177 = vmin.f32 %v1129, %v1150
    %v1178 = vmin.f32 %v1130, %v1152
    %v1179 = vmin.f32 %v1131, %v1154
    %v1180 = vmin.f32 %v1132, %v1156
    %v1181 = vmin.f32 %v1133, %v1158
    %v1182 = vmin.f32 %v1134, %v1160
    %v1183 = vmin.f32 %v1135, %v1162
    %v1184 = vmin.f32 %v1136, %v1164
    %v1185 = vmin.f32 %v1137, %v1166
    %v1186 = vmin.f32 %v1138, %v1168
    %v1187 = vmin.f32 %v1139, %v1170
    %v1188 = vmin.f32 %v1140, %v1172
    %1189 = vst.msk [vmem:[#allocation3] sm:$0xff] %vm1108, %v1173
    %1190 = vst.msk [vmem:[#allocation3 + $0x8] sm:$0xff] %vm1108, %v1174
    %1191 = vst.msk [vmem:[#allocation3 + $0x10] sm:$0xff] %vm1108, %v1175
    %1192 = vst.msk [vmem:[#allocation3 + $0x18] sm:$0xff] %vm1108, %v1176
    %1193 = vst.msk [vmem:[#allocation3 + $0x20] sm:$0xff] %vm1108, %v1177
    %1194 = vst.msk [vmem:[#allocation3 + $0x28] sm:$0xff] %vm1108, %v1178
    %1195 = vst.msk [vmem:[#allocation3 + $0x30] sm:$0xff] %vm1108, %v1179
    %1196 = vst.msk [vmem:[#allocation3 + $0x38] sm:$0xff] %vm1108, %v1180
    %1197 = vst.msk [vmem:[#allocation3 + $0x40] sm:$0xff] %vm1108, %v1181
    %1198 = vst.msk [vmem:[#allocation3 + $0x48] sm:$0xff] %vm1108, %v1182
    %1199 = vst.msk [vmem:[#allocation3 + $0x50] sm:$0xff] %vm1108, %v1183
    %1200 = vst.msk [vmem:[#allocation3 + $0x58] sm:$0xff] %vm1108, %v1184
    %1201 = vst.msk [vmem:[#allocation3 + $0x60] sm:$0xff] %vm1108, %v1185
    %1202 = vst.msk [vmem:[#allocation3 + $0x68] sm:$0xff] %vm1108, %v1186
    %1203 = vst.msk [vmem:[#allocation3 + $0x70] sm:$0xff] %vm1108, %v1187
    %1204 = vst.msk [vmem:[#allocation3 + $0x78] sm:$0xff] %vm1108, %v1188
    // Predicated region
    $region26: #{tpu_custom_call.1} parent=1 // pred_check
      %p1205 = pneg %p33
    $region27: #{tpu_custom_call.1} parent=1 // pred_check_branch
      %1207 = sbr.rel (%p1205) target = $region29
    $region28: #{tpu_custom_call.1} parent=1 // pred_region
      %s1208 = smul.u32 0, 128
      %v1209 = vlaneseq
      %v1210 = vshrl.u32 %v1209, 7
      %v1211 = vadd.s32 %v1210, 8
      %v1212 = vadd.s32 %v1210, 16
      %v1213 = vadd.s32 %v1210, 24
      %v1214 = vadd.s32 %v1210, 32
      %v1215 = vadd.s32 %v1210, 40
      %v1216 = vadd.s32 %v1210, 48
      %v1217 = vadd.s32 %v1210, 56
      %v1218 = vadd.s32 %v1210, 64
      %v1219 = vadd.s32 %v1210, 72
      %v1220 = vadd.s32 %v1210, 80
      %v1221 = vadd.s32 %v1210, 88
      %v1222 = vadd.s32 %v1210, 96
      %v1223 = vadd.s32 %v1210, 104
      %v1224 = vadd.s32 %v1210, 112
      %v1225 = vadd.s32 %v1210, 120
      %v1226 = vstv %s1208
      %v1227 = vadd.s32 %v1226, %v1210
      %v1228 = vadd.s32 %v1226, %v1211
      %v1229 = vadd.s32 %v1226, %v1212
      %v1230 = vadd.s32 %v1226, %v1213
      %v1231 = vadd.s32 %v1226, %v1214
      %v1232 = vadd.s32 %v1226, %v1215
      %v1233 = vadd.s32 %v1226, %v1216
      %v1234 = vadd.s32 %v1226, %v1217
      %v1235 = vadd.s32 %v1226, %v1218
      %v1236 = vadd.s32 %v1226, %v1219
      %v1237 = vadd.s32 %v1226, %v1220
      %v1238 = vadd.s32 %v1226, %v1221
      %v1239 = vadd.s32 %v1226, %v1222
      %v1240 = vadd.s32 %v1226, %v1223
      %v1241 = vadd.s32 %v1226, %v1224
      %v1242 = vadd.s32 %v1226, %v1225
      %vm1243 = vcmp.lt.s32.totalorder %v1227, 8
      %vm1244 = vcmp.lt.s32.totalorder %v1228, 8
      %vm1245 = vcmp.lt.s32.totalorder %v1229, 8
      %vm1246 = vcmp.lt.s32.totalorder %v1230, 8
      %vm1247 = vcmp.lt.s32.totalorder %v1231, 8
      %vm1248 = vcmp.lt.s32.totalorder %v1232, 8
      %vm1249 = vcmp.lt.s32.totalorder %v1233, 8
      %vm1250 = vcmp.lt.s32.totalorder %v1234, 8
      %vm1251 = vcmp.lt.s32.totalorder %v1235, 8
      %vm1252 = vcmp.lt.s32.totalorder %v1236, 8
      %vm1253 = vcmp.lt.s32.totalorder %v1237, 8
      %vm1254 = vcmp.lt.s32.totalorder %v1238, 8
      %vm1255 = vcmp.lt.s32.totalorder %v1239, 8
      %vm1256 = vcmp.lt.s32.totalorder %v1240, 8
      %vm1257 = vcmp.lt.s32.totalorder %v1241, 8
      %vm1258 = vcmp.lt.s32.totalorder %v1242, 8
      %v1259 = vld [vmem:[#allocation2] sm:$0xff]
      %v1260 = vld [vmem:[#allocation2 + $0x8] sm:$0xff]
      %v1261 = vld [vmem:[#allocation2 + $0x10] sm:$0xff]
      %v1262 = vld [vmem:[#allocation2 + $0x18] sm:$0xff]
      %v1263 = vld [vmem:[#allocation2 + $0x20] sm:$0xff]
      %v1264 = vld [vmem:[#allocation2 + $0x28] sm:$0xff]
      %v1265 = vld [vmem:[#allocation2 + $0x30] sm:$0xff]
      %v1266 = vld [vmem:[#allocation2 + $0x38] sm:$0xff]
      %v1267 = vld [vmem:[#allocation2 + $0x40] sm:$0xff]
      %v1268 = vld [vmem:[#allocation2 + $0x48] sm:$0xff]
      %v1269 = vld [vmem:[#allocation2 + $0x50] sm:$0xff]
      %v1270 = vld [vmem:[#allocation2 + $0x58] sm:$0xff]
      %v1271 = vld [vmem:[#allocation2 + $0x60] sm:$0xff]
      %v1272 = vld [vmem:[#allocation2 + $0x68] sm:$0xff]
      %v1273 = vld [vmem:[#allocation2 + $0x70] sm:$0xff]
      %v1274 = vld [vmem:[#allocation2 + $0x78] sm:$0xff]
      %v1275 = vld [vmem:[#allocation3] sm:$0xff]
      %v1276 = vld [vmem:[#allocation3 + $0x8] sm:$0xff]
      %v1277 = vld [vmem:[#allocation3 + $0x10] sm:$0xff]
      %v1278 = vld [vmem:[#allocation3 + $0x18] sm:$0xff]
      %v1279 = vld [vmem:[#allocation3 + $0x20] sm:$0xff]
      %v1280 = vld [vmem:[#allocation3 + $0x28] sm:$0xff]
      %v1281 = vld [vmem:[#allocation3 + $0x30] sm:$0xff]
      %v1282 = vld [vmem:[#allocation3 + $0x38] sm:$0xff]
      %v1283 = vld [vmem:[#allocation3 + $0x40] sm:$0xff]
      %v1284 = vld [vmem:[#allocation3 + $0x48] sm:$0xff]
      %v1285 = vld [vmem:[#allocation3 + $0x50] sm:$0xff]
      %v1286 = vld [vmem:[#allocation3 + $0x58] sm:$0xff]
      %v1287 = vld [vmem:[#allocation3 + $0x60] sm:$0xff]
      %v1288 = vld [vmem:[#allocation3 + $0x68] sm:$0xff]
      %v1289 = vld [vmem:[#allocation3 + $0x70] sm:$0xff]
      %v1290 = vld [vmem:[#allocation3 + $0x78] sm:$0xff]
      %v1291 = vsub.f32 %v1259, %v1275
      %v1292 = vsub.f32 %v1260, %v1276
      %v1293 = vsub.f32 %v1261, %v1277
      %v1294 = vsub.f32 %v1262, %v1278
      %v1295 = vsub.f32 %v1263, %v1279
      %v1296 = vsub.f32 %v1264, %v1280
      %v1297 = vsub.f32 %v1265, %v1281
      %v1298 = vsub.f32 %v1266, %v1282
      %v1299 = vsub.f32 %v1267, %v1283
      %v1300 = vsub.f32 %v1268, %v1284
      %v1301 = vsub.f32 %v1269, %v1285
      %v1302 = vsub.f32 %v1270, %v1286
      %v1303 = vsub.f32 %v1271, %v1287
      %v1304 = vsub.f32 %v1272, %v1288
      %v1305 = vsub.f32 %v1273, %v1289
      %v1306 = vsub.f32 %v1274, %v1290
      %v1307 = vadd.f32 %v1291, 0.3
      %v1308 = vadd.f32 %v1292, 0.3
      %v1309 = vadd.f32 %v1293, 0.3
      %v1310 = vadd.f32 %v1294, 0.3
      %v1311 = vadd.f32 %v1295, 0.3
      %v1312 = vadd.f32 %v1296, 0.3
      %v1313 = vadd.f32 %v1297, 0.3
      %v1314 = vadd.f32 %v1298, 0.3
      %v1315 = vadd.f32 %v1299, 0.3
      %v1316 = vadd.f32 %v1300, 0.3
      %v1317 = vadd.f32 %v1301, 0.3
      %v1318 = vadd.f32 %v1302, 0.3
      %v1319 = vadd.f32 %v1303, 0.3
      %v1320 = vadd.f32 %v1304, 0.3
      %v1321 = vadd.f32 %v1305, 0.3
      %v1322 = vadd.f32 %v1306, 0.3
      %v1323 = vmax.f32 %v1307, 0.0
      %v1324 = vmax.f32 %v1308, 0.0
      %v1325 = vmax.f32 %v1309, 0.0
      %v1326 = vmax.f32 %v1310, 0.0
      %v1327 = vmax.f32 %v1311, 0.0
      %v1328 = vmax.f32 %v1312, 0.0
      %v1329 = vmax.f32 %v1313, 0.0
      %v1330 = vmax.f32 %v1314, 0.0
      %v1331 = vmax.f32 %v1315, 0.0
      %v1332 = vmax.f32 %v1316, 0.0
      %v1333 = vmax.f32 %v1317, 0.0
      %v1334 = vmax.f32 %v1318, 0.0
      %v1335 = vmax.f32 %v1319, 0.0
      %v1336 = vmax.f32 %v1320, 0.0
      %v1337 = vmax.f32 %v1321, 0.0
      %v1338 = vmax.f32 %v1322, 0.0
      %v1339 = vsel %vm1243, %v1323, 0.0
      %v1340 = vsel %vm1244, %v1324, 0.0
      %v1341 = vsel %vm1245, %v1325, 0.0
      %v1342 = vsel %vm1246, %v1326, 0.0
      %v1343 = vsel %vm1247, %v1327, 0.0
      %v1344 = vsel %vm1248, %v1328, 0.0
      %v1345 = vsel %vm1249, %v1329, 0.0
      %v1346 = vsel %vm1250, %v1330, 0.0
      %v1347 = vsel %vm1251, %v1331, 0.0
      %v1348 = vsel %vm1252, %v1332, 0.0
      %v1349 = vsel %vm1253, %v1333, 0.0
      %v1350 = vsel %vm1254, %v1334, 0.0
      %v1351 = vsel %vm1255, %v1335, 0.0
      %v1352 = vsel %vm1256, %v1336, 0.0
      %v1353 = vsel %vm1257, %v1337, 0.0
      %v1354 = vsel %vm1258, %v1338, 0.0
      %1355 = vst.msk [vmem:[%s4] sm:$0xff] %vm1108, %v1339
      %1356 = vst.msk [vmem:[%s4 + $0x8] sm:$0xff] %vm1108, %v1340
      %1357 = vst.msk [vmem:[%s4 + $0x10] sm:$0xff] %vm1108, %v1341
      %1358 = vst.msk [vmem:[%s4 + $0x18] sm:$0xff] %vm1108, %v1342
      %1359 = vst.msk [vmem:[%s4 + $0x20] sm:$0xff] %vm1108, %v1343
      %1360 = vst.msk [vmem:[%s4 + $0x28] sm:$0xff] %vm1108, %v1344
      %1361 = vst.msk [vmem:[%s4 + $0x30] sm:$0xff] %vm1108, %v1345
      %1362 = vst.msk [vmem:[%s4 + $0x38] sm:$0xff] %vm1108, %v1346
      %1363 = vst.msk [vmem:[%s4 + $0x40] sm:$0xff] %vm1108, %v1347
      %1364 = vst.msk [vmem:[%s4 + $0x48] sm:$0xff] %vm1108, %v1348
      %1365 = vst.msk [vmem:[%s4 + $0x50] sm:$0xff] %vm1108, %v1349
      %1366 = vst.msk [vmem:[%s4 + $0x58] sm:$0xff] %vm1108, %v1350
      %1367 = vst.msk [vmem:[%s4 + $0x60] sm:$0xff] %vm1108, %v1351
      %1368 = vst.msk [vmem:[%s4 + $0x68] sm:$0xff] %vm1108, %v1352
      %1369 = vst.msk [vmem:[%s4 + $0x70] sm:$0xff] %vm1108, %v1353
      %1370 = vst.msk [vmem:[%s4 + $0x78] sm:$0xff] %vm1108, %v1354
    $region29: #{tpu_custom_call.1} parent=1 // pred_fallthru
      _
    // Predicated region
    $region30: #{tpu_custom_call.1} parent=1 // pred_check
      _
    $region31: #{tpu_custom_call.1} parent=1 // pred_check_branch
      %1372 = sbr.rel (0) target = $region33
    $region32: #{tpu_custom_call.1} parent=1 // pred_region
      _
    $region33: #{tpu_custom_call.1} parent=1 // pred_fallthru
      _
    // Predicated region
    $region34: #{tpu_custom_call.1} parent=1 // pred_check
      _
    $region35: #{tpu_custom_call.1} parent=1 // pred_check_branch
      %1374 = sbr.rel (0) target = $region37
    $region36: #{tpu_custom_call.1} parent=1 // pred_region
      _
    $region37: #{tpu_custom_call.1} parent=1 // pred_fallthru
      _
    %1375 = vsyncpa [#allocation5], 1

</llo_original>
